<compile_context>
chip_gen: v7x
topology: tpu7x:2x2x1
jax: 0.10.0
libtpu: 0.0.40
codegen_flags: <defaults>
</compile_context>

<pallas_src>
import functools
import math

import jax
import jax.numpy as jnp
import numpy as np
from jax.experimental import pallas as pl
from jax.experimental.pallas import tpu as pltpu


# ---------------------------------------------------------------------------
# Kernel
# ---------------------------------------------------------------------------
def _block_kernel(x_ref, wcat_ref, w2_ref, vecs_ref, hd_mask_ref, bias_ref,
                  out_ref, *, n_head, mm_dtype):
    R, C = x_ref.shape                 # R = (B / n_chunks) * T rows per grid step
    H4 = 4 * C
    eps = 1e-5
    inv_sqrt2 = 1.0 / math.sqrt(2.0)

    x = x_ref[...].astype(jnp.float32)                 # (R, C)

    # Packed (1, N) vectors — one DMA instead of eight (f32: elementwise path stays f32).
    ln1_g = vecs_ref[0:1, 0:C]
    ln1_b = vecs_ref[1:2, 0:C]
    ln2_g = vecs_ref[2:3, 0:C]
    ln2_b = vecs_ref[3:4, 0:C]
    bqkv  = vecs_ref[4:5, 0:3 * C]
    bp    = vecs_ref[5:6, 0:C]
    b1    = vecs_ref[6:7, 0:H4]
    b2    = vecs_ref[7:8, 0:C]

    # Packed weight slab [w1 | wqkv | wp] — w1 segment is 128-lane aligned.
    w1   = wcat_ref[:, 0:H4]
    wqkv = wcat_ref[:, H4:H4 + 3 * C]
    wp   = wcat_ref[:, H4 + 3 * C:H4 + 4 * C]

    def layernorm(h, g, b):
        mu = jnp.mean(h, axis=-1, keepdims=True)
        var = jnp.mean((h - mu) ** 2, axis=-1, keepdims=True)
        return (h - mu) * jax.lax.rsqrt(var + eps) * g + b

    # ---- attention branch ---------------------------------------------------
    h = layernorm(x, ln1_g, ln1_b)
    qkv = jnp.dot(h.astype(mm_dtype), wqkv,
                  preferred_element_type=jnp.float32) + bqkv          # (R, 3C) f32
    q = qkv[:, 0:C]            # 1/sqrt(D) already folded into the Q weight/bias
    k = qkv[:, C:2 * C]
    v = qkv[:, 2 * C:3 * C]

    # Block-diagonal head slabs: row j of {K,V}_blk holds k/v[j mod R] restricted
    # to head (j // R)'s columns; hd_mask[j, c] = 1 iff (j // R) == (c // D).
    hd = hd_mask_ref[...]                                              # (n_head*R, C)
    k_blk = jnp.concatenate([k] * n_head, axis=0).astype(mm_dtype) * hd
    v_blk = jnp.concatenate([v] * n_head, axis=0).astype(mm_dtype) * hd

    # All-head, all-batch scores in one MXU push: (R, n_head*R).
    scores = jax.lax.dot_general(q.astype(mm_dtype), k_blk,
                                 (((1,), (1,)), ((), ())),
                                 preferred_element_type=jnp.float32)
    scores = scores + bias_ref[...]    # causal cross-conditional + batch-block mask (f32)

    # Segmented per-head softmax with a PER-HEAD max stabiliser (static unroll over heads).
    p_parts = []
    for hh in range(n_head):
        sl = scores[:, hh * R:(hh + 1) * R]
        m_h = jnp.max(sl, axis=-1, keepdims=True)      # finite: diagonal always allowed
        p_parts.append(jnp.exp(sl - m_h))
    p = jnp.concatenate(p_parts, axis=-1)              # (R, n_head*R)

    p_mm = p.astype(mm_dtype)
    y_un  = jnp.dot(p_mm, v_blk, preferred_element_type=jnp.float32)  # (R, C), heads in place
    denom = jnp.dot(p_mm, hd,    preferred_element_type=jnp.float32)  # (R, C), >= 1
    y = y_un / denom                                                   # exact divide (f32)

    y = jnp.dot(y.astype(mm_dtype), wp, preferred_element_type=jnp.float32) + bp
    x1 = x + y                                        # residual 1

    # ---- MLP branch ----------------------------------------------------------
    h2 = layernorm(x1, ln2_g, ln2_b)
    m = jnp.dot(h2.astype(mm_dtype), w1, preferred_element_type=jnp.float32) + b1
    m = m * (0.5 + 0.5 * jax.lax.erf(m * inv_sqrt2))  # exact GELU (PyTorch nn.GELU default)
    m = jnp.dot(m.astype(mm_dtype), w2_ref[...], preferred_element_type=jnp.float32) + b2

    out_ref[...] = (x1 + m).astype(out_ref.dtype)


# ---------------------------------------------------------------------------
# One-time constant preparation (hoisted out of the forward path)
# ---------------------------------------------------------------------------
def _tensorcores_per_chip():
    # v7x has 2 TensorCores per chip; v5e / v6e have 1.
    try:
        kind = jax.devices()[0].device_kind.lower()
    except Exception:
        return 1
    return 2 if "v7" in kind else 1


def prepare_block(params, *, n_head, B, T, mm_dtype=jnp.float32, n_chunks=None):
    C = params["wq"].shape[0]
    assert T % 3 == 0, "T must be 3 * block_size"
    assert C % n_head == 0
    t_cond = T // 3
    D = C // n_head

    if n_chunks is None:
        # Keep a 2-way parallel grid on v7x (one batch chunk per TensorCore);
        # fuse the whole batch into a single grid step on v5e / v6e.
        n_chunks = 2 if (_tensorcores_per_chip() >= 2 and B % 2 == 0) else 1
    assert B % n_chunks == 0
    R = (B // n_chunks) * T            # rows handled per grid step
    NT = n_head * R
    scale = 1.0 / math.sqrt(D)

    # Fused QKV with 1/sqrt(D) folded into the Q columns.
    wqkv = jnp.concatenate([params["wq"] * scale, params["wk"], params["wv"]], axis=1)
    bqkv = jnp.concatenate([params["bq"] * scale, params["bk"], params["bv"]], axis=1)

    # Packed weight slab [w1 | wqkv | wp]  -> (C, 8C); w2 separate (4C, C).
    wcat = jnp.concatenate([params["w1"], wqkv, params["wp"]], axis=1).astype(mm_dtype)
    w2 = params["w2"].astype(mm_dtype)

    # Eight small (1, N) vectors packed into one lane-dense (8, 4C) f32 slab.
    W = 4 * C
    pad = lambda vv: jnp.pad(vv, ((0, 0), (0, W - vv.shape[1])))
    vecs = jnp.concatenate([
        pad(params["ln1_g"]), pad(params["ln1_b"]),
        pad(params["ln2_g"]), pad(params["ln2_b"]),
        pad(bqkv), pad(params["bp"]),
        pad(params["b1"]), pad(params["b2"]),
    ], axis=0).astype(jnp.float32)                                     # (8, 4C)

    # Head-selection mask: hd[j, c] = 1 iff (j // R) == (c // D).  0/1 exact in bf16.
    j = jnp.arange(NT)
    hd_mask = (j[:, None] // R == jnp.arange(C)[None, :] // D).astype(mm_dtype)

    # Additive attention bias (R, NT):
    #   row r = b*T + t ; col j = h*R + b'*T + s
    #   allowed iff b == b'  and  (s mod t_cond) <= (t mod t_cond)
    r = jnp.arange(R)
    b_row, t_row = r // T, (r % T) % t_cond
    rc = j % R
    b_col, s_col = rc // T, (rc % T) % t_cond
    allowed = (b_row[:, None] == b_col[None, :]) & (s_col[None, :] <= t_row[:, None])
    attn_bias = jnp.where(allowed, 0.0, -1e30).astype(jnp.float32)

    consts = tuple(jax.device_put(a) for a in (wcat, w2, vecs, hd_mask, attn_bias))
    meta = dict(n_head=n_head, C=C, T=T, B=B, n_chunks=n_chunks, R=R, mm_dtype=mm_dtype)
    return consts, meta


# ---------------------------------------------------------------------------
# Forward wrapper
# ---------------------------------------------------------------------------
def block_forward(x, consts, meta):
    B, T, C = x.shape
    assert B == meta["B"] and T == meta["T"] and C == meta["C"]
    n_chunks, R = meta["n_chunks"], meta["R"]

    x_flat = x.reshape(B * T, C)
    kernel = functools.partial(_block_kernel, n_head=meta["n_head"],
                               mm_dtype=meta["mm_dtype"])

    row_spec = pl.BlockSpec((R, C), lambda i: (i, 0))
    # Constant index_map -> weights / masks stay resident in VMEM across grid steps.
    const_specs = [pl.BlockSpec(c.shape, lambda i: (0, 0)) for c in consts]

    out_flat = pl.pallas_call(
        kernel,
        out_shape=jax.ShapeDtypeStruct((B * T, C), x.dtype),
        grid_spec=pltpu.PrefetchScalarGridSpec(
            num_scalar_prefetch=0,
            grid=(n_chunks,),
            in_specs=[row_spec] + const_specs,
            out_specs=row_spec,
        ),
        compiler_params=pltpu.CompilerParams(
            dimension_semantics=("parallel",),   # spreads batch chunks over v7x's 2 TCs
        ),
    )(x_flat, *consts)
    return out_flat.reshape(B, T, C)


# ---------------------------------------------------------------------------
# Pure-JAX reference (mirrors the PyTorch forward, dropout = identity)
# ---------------------------------------------------------------------------
def block_reference(x, params, *, n_head):
    B, T, C = x.shape
    D = C // n_head
    t = T // 3
    eps = 1e-5

    def ln(h, g, b):
        mu = jnp.mean(h, axis=-1, keepdims=True)
        var = jnp.mean((h - mu) ** 2, axis=-1, keepdims=True)
        return (h - mu) / jnp.sqrt(var + eps) * g[0] + b[0]

    h = ln(x, params["ln1_g"], params["ln1_b"])
    q = h @ params["wq"] + params["bq"][0]
    k = h @ params["wk"] + params["bk"][0]
    v = h @ params["wv"] + params["bv"][0]
    q = q.reshape(B, T, n_head, D).transpose(0, 2, 1, 3)
    k = k.reshape(B, T, n_head, D).transpose(0, 2, 1, 3)
    v = v.reshape(B, T, n_head, D).transpose(0, 2, 1, 3)
    att = jnp.einsum("bhtd,bhsd->bhts", q, k) / math.sqrt(D)
    row = jnp.arange(T)[:, None] % t
    col = jnp.arange(T)[None, :] % t
    att = jnp.where(col <= row, att, -jnp.inf)
    att = jax.nn.softmax(att, axis=-1)
    y = jnp.einsum("bhts,bhsd->bhtd", att, v)
    y = y.transpose(0, 2, 1, 3).reshape(B, T, C)
    y = y @ params["wp"] + params["bp"][0]
    x1 = x + y
    h2 = ln(x1, params["ln2_g"], params["ln2_b"])
    m = h2 @ params["w1"] + params["b1"][0]
    m = 0.5 * m * (1.0 + jax.lax.erf(m / math.sqrt(2.0)))
    m = m @ params["w2"] + params["b2"][0]
    return x1 + m


# ---------------------------------------------------------------------------
# Main
# ---------------------------------------------------------------------------
if __name__ == "__main__":
    # config: n_embd=32, n_head=4, block_size=8 (=> t=8, T=3*t=24), batch=2
    B, n_head, C = 2, 4, 32
    t = 8
    T = 3 * t
    H4 = 4 * C

    key = jax.random.PRNGKey(0)
    keys = jax.random.split(key, 16)
    s = 0.02

    params = {
        "ln1_g": jnp.ones((1, C), jnp.float32),
        "ln1_b": jnp.zeros((1, C), jnp.float32),
        "wq": s * jax.random.normal(keys[0], (C, C), jnp.float32),
        "bq": s * jax.random.normal(keys[1], (1, C), jnp.float32),
        "wk": s * jax.random.normal(keys[2], (C, C), jnp.float32),
        "bk": s * jax.random.normal(keys[3], (1, C), jnp.float32),
        "wv": s * jax.random.normal(keys[4], (C, C), jnp.float32),
        "bv": s * jax.random.normal(keys[5], (1, C), jnp.float32),
        "wp": s * jax.random.normal(keys[6], (C, C), jnp.float32),
        "bp": s * jax.random.normal(keys[7], (1, C), jnp.float32),
        "ln2_g": jnp.ones((1, C), jnp.float32),
        "ln2_b": jnp.zeros((1, C), jnp.float32),
        "w1": s * jax.random.normal(keys[8], (C, H4), jnp.float32),
        "b1": s * jax.random.normal(keys[9], (1, H4), jnp.float32),
        "w2": s * jax.random.normal(keys[10], (H4, C), jnp.float32),
        "b2": s * jax.random.normal(keys[11], (1, C), jnp.float32),
    }

    x = jax.random.normal(keys[12], (B, T, C), jnp.float32)
    ref = block_reference(x, params, n_head=n_head)

    # f32 MXU path: tight parity with the PyTorch float32 forward
    # (exact divide + per-head max softmax, so tolerances tightened vs. previous version).
    consts32, meta32 = prepare_block(params, n_head=n_head, B=B, T=T,
                                     mm_dtype=jnp.float32)
    fwd32 = jax.jit(lambda xx: block_forward(xx, consts32, meta32))
    out32 = jax.block_until_ready(fwd32(x))
    np.testing.assert_allclose(np.asarray(out32), np.asarray(ref), rtol=1e-4, atol=1e-5)

    # bf16 MXU-operand path (f32 accumulation; LayerNorm/softmax/GELU/bias stay f32).
    consts16, meta16 = prepare_block(params, n_head=n_head, B=B, T=T,
                                     mm_dtype=jnp.bfloat16)
    fwd16 = jax.jit(lambda xx: block_forward(xx, consts16, meta16))
    out16 = jax.block_until_ready(fwd16(x))
    np.testing.assert_allclose(np.asarray(out16), np.asarray(ref), rtol=2e-2, atol=3e-3)

    print("KERNEL_OK")
</pallas_src>

<mosaic_0001>
module attributes {stable_mosaic.version = 11 : i64} {
  func.func @_block_kernel(%arg0: i32, %arg1: memref<48x32xf32, #tpu.memory_space<vmem>>, %arg2: memref<32x256xf32, #tpu.memory_space<vmem>>, %arg3: memref<128x32xf32, #tpu.memory_space<vmem>>, %arg4: memref<8x128xf32, #tpu.memory_space<vmem>>, %arg5: memref<192x32xf32, #tpu.memory_space<vmem>>, %arg6: memref<48x192xf32, #tpu.memory_space<vmem>>, %arg7: memref<48x32xf32, #tpu.memory_space<vmem>>) attributes {dimension_semantics = [#tpu.dimension_semantics<parallel>], iteration_bounds = array<i64: 1>, scalar_prefetch = 0 : i64, scratch_operands = 0 : i64, tpu.core_type = #tpu.core_type<tc>, window_params = [{transform_indices = @transform_0, window_bounds = array<i64: 48, 32>}, {pipeline_mode = #tpu.pipeline_mode<synchronous>, transform_indices = @transform_1, window_bounds = array<i64: 32, 256>}, {pipeline_mode = #tpu.pipeline_mode<synchronous>, transform_indices = @transform_2, window_bounds = array<i64: 128, 32>}, {pipeline_mode = #tpu.pipeline_mode<synchronous>, transform_indices = @transform_3, window_bounds = array<i64: 8, 128>}, {pipeline_mode = #tpu.pipeline_mode<synchronous>, transform_indices = @transform_4, window_bounds = array<i64: 192, 32>}, {pipeline_mode = #tpu.pipeline_mode<synchronous>, transform_indices = @transform_5, window_bounds = array<i64: 48, 192>}, {transform_indices = @transform_6, window_bounds = array<i64: 48, 32>}]} {
    %c0 = arith.constant 0 : index
    %c0_0 = arith.constant 0 : index
    %0 = vector.load %arg1[%c0, %c0_0] : memref<48x32xf32, #tpu.memory_space<vmem>>, vector<48x32xf32>
    %c0_1 = arith.constant 0 : index
    %c0_2 = arith.constant 0 : index
    %1 = vector.load %arg4[%c0_1, %c0_2] : memref<8x128xf32, #tpu.memory_space<vmem>>, vector<1x32xf32>
    %c1 = arith.constant 1 : index
    %c0_3 = arith.constant 0 : index
    %2 = vector.load %arg4[%c1, %c0_3] : memref<8x128xf32, #tpu.memory_space<vmem>>, vector<1x32xf32>
    %c2 = arith.constant 2 : index
    %c0_4 = arith.constant 0 : index
    %3 = vector.load %arg4[%c2, %c0_4] : memref<8x128xf32, #tpu.memory_space<vmem>>, vector<1x32xf32>
    %c3 = arith.constant 3 : index
    %c0_5 = arith.constant 0 : index
    %4 = vector.load %arg4[%c3, %c0_5] : memref<8x128xf32, #tpu.memory_space<vmem>>, vector<1x32xf32>
    %c4 = arith.constant 4 : index
    %c0_6 = arith.constant 0 : index
    %5 = vector.load %arg4[%c4, %c0_6] : memref<8x128xf32, #tpu.memory_space<vmem>>, vector<1x96xf32>
    %c5 = arith.constant 5 : index
    %c0_7 = arith.constant 0 : index
    %6 = vector.load %arg4[%c5, %c0_7] : memref<8x128xf32, #tpu.memory_space<vmem>>, vector<1x32xf32>
    %c6 = arith.constant 6 : index
    %c0_8 = arith.constant 0 : index
    %7 = vector.load %arg4[%c6, %c0_8] : memref<8x128xf32, #tpu.memory_space<vmem>>, vector<1x128xf32>
    %c7 = arith.constant 7 : index
    %c0_9 = arith.constant 0 : index
    %8 = vector.load %arg4[%c7, %c0_9] : memref<8x128xf32, #tpu.memory_space<vmem>>, vector<1x32xf32>
    %c0_10 = arith.constant 0 : index
    %c0_11 = arith.constant 0 : index
    %9 = vector.load %arg2[%c0_10, %c0_11] : memref<32x256xf32, #tpu.memory_space<vmem>>, vector<32x128xf32>
    %c0_12 = arith.constant 0 : index
    %c128 = arith.constant 128 : index
    %10 = vector.load %arg2[%c0_12, %c128] : memref<32x256xf32, #tpu.memory_space<vmem>>, vector<32x96xf32>
    %c0_13 = arith.constant 0 : index
    %c224 = arith.constant 224 : index
    %11 = vector.load %arg2[%c0_13, %c224] : memref<32x256xf32, #tpu.memory_space<vmem>>, vector<32x32xf32>
    %cst = arith.constant dense<0.000000e+00> : vector<48xf32>
    %12 = vector.multi_reduction <add>, %0, %cst [1] : vector<48x32xf32> to vector<48xf32>
    %13 = vector.shape_cast %12 : vector<48xf32> to vector<48x1xf32>
    %cst_14 = arith.constant 3.200000e+01 : f32
    %14 = vector.broadcast %cst_14 : f32 to vector<48x1xf32>
    %15 = arith.divf %13, %14 : vector<48x1xf32>
    %16 = vector.broadcast %15 : vector<48x1xf32> to vector<48x32xf32>
    %17 = arith.subf %0, %16 : vector<48x32xf32>
    %18 = arith.mulf %17, %17 : vector<48x32xf32>
    %cst_15 = arith.constant dense<0.000000e+00> : vector<48xf32>
    %19 = vector.multi_reduction <add>, %18, %cst_15 [1] : vector<48x32xf32> to vector<48xf32>
    %20 = vector.shape_cast %19 : vector<48xf32> to vector<48x1xf32>
    %cst_16 = arith.constant 3.200000e+01 : f32
    %21 = vector.broadcast %cst_16 : f32 to vector<48x1xf32>
    %22 = arith.divf %20, %21 : vector<48x1xf32>
    %23 = vector.broadcast %15 : vector<48x1xf32> to vector<48x32xf32>
    %24 = arith.subf %0, %23 : vector<48x32xf32>
    %cst_17 = arith.constant 9.99999974E-6 : f32
    %25 = vector.broadcast %cst_17 : f32 to vector<48x1xf32>
    %26 = arith.addf %22, %25 : vector<48x1xf32>
    %27 = math.rsqrt %26 : vector<48x1xf32>
    %28 = vector.broadcast %27 : vector<48x1xf32> to vector<48x32xf32>
    %29 = arith.mulf %24, %28 : vector<48x32xf32>
    %30 = vector.broadcast %1 : vector<1x32xf32> to vector<48x32xf32>
    %31 = arith.mulf %29, %30 : vector<48x32xf32>
    %32 = vector.broadcast %2 : vector<1x32xf32> to vector<48x32xf32>
    %33 = arith.addf %31, %32 : vector<48x32xf32>
    %cst_18 = arith.constant dense<0.000000e+00> : vector<48x96xf32>
    %34 = tpu.matmul %33, %10, %cst_18 {dimension_numbers = #tpu.dot_dimension_numbers<[1], [0], [0], [1], [0, 0, 1, 1], [], []>} : vector<48x32xf32>, vector<32x96xf32>, vector<48x96xf32> -> vector<48x96xf32>
    %35 = vector.broadcast %5 : vector<1x96xf32> to vector<48x96xf32>
    %36 = arith.addf %34, %35 : vector<48x96xf32>
    %37 = vector.extract_strided_slice %36 {offsets = [0, 0], sizes = [48, 32], strides = [1, 1]} : vector<48x96xf32> to vector<48x32xf32>
    %38 = vector.extract_strided_slice %36 {offsets = [0, 32], sizes = [48, 32], strides = [1, 1]} : vector<48x96xf32> to vector<48x32xf32>
    %39 = vector.extract_strided_slice %36 {offsets = [0, 64], sizes = [48, 32], strides = [1, 1]} : vector<48x96xf32> to vector<48x32xf32>
    %c0_19 = arith.constant 0 : index
    %c0_20 = arith.constant 0 : index
    %40 = vector.load %arg5[%c0_19, %c0_20] : memref<192x32xf32, #tpu.memory_space<vmem>>, vector<192x32xf32>
    %41 = tpu.concatenate %38, %38, %38, %38 in 0 : vector<48x32xf32>, vector<48x32xf32>, vector<48x32xf32>, vector<48x32xf32> -> vector<192x32xf32>
    %42 = arith.mulf %41, %40 : vector<192x32xf32>
    %43 = tpu.concatenate %39, %39, %39, %39 in 0 : vector<48x32xf32>, vector<48x32xf32>, vector<48x32xf32>, vector<48x32xf32> -> vector<192x32xf32>
    %44 = arith.mulf %43, %40 : vector<192x32xf32>
    %cst_21 = arith.constant dense<0.000000e+00> : vector<48x192xf32>
    %45 = tpu.matmul %37, %42, %cst_21 {dimension_numbers = #tpu.dot_dimension_numbers<[1], [1], [0], [0], [0, 0, 1, 0], [], []>} : vector<48x32xf32>, vector<192x32xf32>, vector<48x192xf32> -> vector<48x192xf32>
    %c0_22 = arith.constant 0 : index
    %c0_23 = arith.constant 0 : index
    %46 = vector.load %arg6[%c0_22, %c0_23] : memref<48x192xf32, #tpu.memory_space<vmem>>, vector<48x192xf32>
    %47 = arith.addf %45, %46 : vector<48x192xf32>
    %48 = vector.extract_strided_slice %47 {offsets = [0, 0], sizes = [48, 48], strides = [1, 1]} : vector<48x192xf32> to vector<48x48xf32>
    %cst_24 = arith.constant dense<0xFF800000> : vector<48xf32>
    %49 = vector.multi_reduction <maximumf>, %48, %cst_24 [1] : vector<48x48xf32> to vector<48xf32>
    %50 = vector.shape_cast %49 : vector<48xf32> to vector<48x1xf32>
    %51 = vector.broadcast %50 : vector<48x1xf32> to vector<48x48xf32>
    %52 = arith.subf %48, %51 : vector<48x48xf32>
    %53 = math.exp %52 : vector<48x48xf32>
    %54 = vector.extract_strided_slice %47 {offsets = [0, 48], sizes = [48, 48], strides = [1, 1]} : vector<48x192xf32> to vector<48x48xf32>
    %cst_25 = arith.constant dense<0xFF800000> : vector<48xf32>
    %55 = vector.multi_reduction <maximumf>, %54, %cst_25 [1] : vector<48x48xf32> to vector<48xf32>
    %56 = vector.shape_cast %55 : vector<48xf32> to vector<48x1xf32>
    %57 = vector.broadcast %56 : vector<48x1xf32> to vector<48x48xf32>
    %58 = arith.subf %54, %57 : vector<48x48xf32>
    %59 = math.exp %58 : vector<48x48xf32>
    %60 = vector.extract_strided_slice %47 {offsets = [0, 96], sizes = [48, 48], strides = [1, 1]} : vector<48x192xf32> to vector<48x48xf32>
    %cst_26 = arith.constant dense<0xFF800000> : vector<48xf32>
    %61 = vector.multi_reduction <maximumf>, %60, %cst_26 [1] : vector<48x48xf32> to vector<48xf32>
    %62 = vector.shape_cast %61 : vector<48xf32> to vector<48x1xf32>
    %63 = vector.broadcast %62 : vector<48x1xf32> to vector<48x48xf32>
    %64 = arith.subf %60, %63 : vector<48x48xf32>
    %65 = math.exp %64 : vector<48x48xf32>
    %66 = vector.extract_strided_slice %47 {offsets = [0, 144], sizes = [48, 48], strides = [1, 1]} : vector<48x192xf32> to vector<48x48xf32>
    %cst_27 = arith.constant dense<0xFF800000> : vector<48xf32>
    %67 = vector.multi_reduction <maximumf>, %66, %cst_27 [1] : vector<48x48xf32> to vector<48xf32>
    %68 = vector.shape_cast %67 : vector<48xf32> to vector<48x1xf32>
    %69 = vector.broadcast %68 : vector<48x1xf32> to vector<48x48xf32>
    %70 = arith.subf %66, %69 : vector<48x48xf32>
    %71 = math.exp %70 : vector<48x48xf32>
    %72 = tpu.concatenate %53, %59, %65, %71 in 1 : vector<48x48xf32>, vector<48x48xf32>, vector<48x48xf32>, vector<48x48xf32> -> vector<48x192xf32>
    %cst_28 = arith.constant dense<0.000000e+00> : vector<48x32xf32>
    %73 = tpu.matmul %72, %44, %cst_28 {dimension_numbers = #tpu.dot_dimension_numbers<[1], [0], [0], [1], [0, 0, 1, 1], [], []>} : vector<48x192xf32>, vector<192x32xf32>, vector<48x32xf32> -> vector<48x32xf32>
    %cst_29 = arith.constant dense<0.000000e+00> : vector<48x32xf32>
    %74 = tpu.matmul %72, %40, %cst_29 {dimension_numbers = #tpu.dot_dimension_numbers<[1], [0], [0], [1], [0, 0, 1, 1], [], []>} : vector<48x192xf32>, vector<192x32xf32>, vector<48x32xf32> -> vector<48x32xf32>
    %75 = arith.divf %73, %74 : vector<48x32xf32>
    %cst_30 = arith.constant dense<0.000000e+00> : vector<48x32xf32>
    %76 = tpu.matmul %75, %11, %cst_30 {dimension_numbers = #tpu.dot_dimension_numbers<[1], [0], [0], [1], [0, 0, 1, 1], [], []>} : vector<48x32xf32>, vector<32x32xf32>, vector<48x32xf32> -> vector<48x32xf32>
    %77 = vector.broadcast %6 : vector<1x32xf32> to vector<48x32xf32>
    %78 = arith.addf %76, %77 : vector<48x32xf32>
    %79 = arith.addf %0, %78 : vector<48x32xf32>
    %cst_31 = arith.constant dense<0.000000e+00> : vector<48xf32>
    %80 = vector.multi_reduction <add>, %79, %cst_31 [1] : vector<48x32xf32> to vector<48xf32>
    %81 = vector.shape_cast %80 : vector<48xf32> to vector<48x1xf32>
    %cst_32 = arith.constant 3.200000e+01 : f32
    %82 = vector.broadcast %cst_32 : f32 to vector<48x1xf32>
    %83 = arith.divf %81, %82 : vector<48x1xf32>
    %84 = vector.broadcast %83 : vector<48x1xf32> to vector<48x32xf32>
    %85 = arith.subf %79, %84 : vector<48x32xf32>
    %86 = arith.mulf %85, %85 : vector<48x32xf32>
    %cst_33 = arith.constant dense<0.000000e+00> : vector<48xf32>
    %87 = vector.multi_reduction <add>, %86, %cst_33 [1] : vector<48x32xf32> to vector<48xf32>
    %88 = vector.shape_cast %87 : vector<48xf32> to vector<48x1xf32>
    %cst_34 = arith.constant 3.200000e+01 : f32
    %89 = vector.broadcast %cst_34 : f32 to vector<48x1xf32>
    %90 = arith.divf %88, %89 : vector<48x1xf32>
    %91 = vector.broadcast %83 : vector<48x1xf32> to vector<48x32xf32>
    %92 = arith.subf %79, %91 : vector<48x32xf32>
    %cst_35 = arith.constant 9.99999974E-6 : f32
    %93 = vector.broadcast %cst_35 : f32 to vector<48x1xf32>
    %94 = arith.addf %90, %93 : vector<48x1xf32>
    %95 = math.rsqrt %94 : vector<48x1xf32>
    %96 = vector.broadcast %95 : vector<48x1xf32> to vector<48x32xf32>
    %97 = arith.mulf %92, %96 : vector<48x32xf32>
    %98 = vector.broadcast %3 : vector<1x32xf32> to vector<48x32xf32>
    %99 = arith.mulf %97, %98 : vector<48x32xf32>
    %100 = vector.broadcast %4 : vector<1x32xf32> to vector<48x32xf32>
    %101 = arith.addf %99, %100 : vector<48x32xf32>
    %cst_36 = arith.constant dense<0.000000e+00> : vector<48x128xf32>
    %102 = tpu.matmul %101, %9, %cst_36 {dimension_numbers = #tpu.dot_dimension_numbers<[1], [0], [0], [1], [0, 0, 1, 1], [], []>} : vector<48x32xf32>, vector<32x128xf32>, vector<48x128xf32> -> vector<48x128xf32>
    %103 = vector.broadcast %7 : vector<1x128xf32> to vector<48x128xf32>
    %104 = arith.addf %102, %103 : vector<48x128xf32>
    %cst_37 = arith.constant 0.707106769 : f32
    %105 = vector.broadcast %cst_37 : f32 to vector<48x128xf32>
    %106 = arith.mulf %104, %105 : vector<48x128xf32>
    %107 = math.erf %106 : vector<48x128xf32>
    %cst_38 = arith.constant 5.000000e-01 : f32
    %108 = vector.broadcast %cst_38 : f32 to vector<48x128xf32>
    %109 = arith.mulf %108, %107 : vector<48x128xf32>
    %cst_39 = arith.constant 5.000000e-01 : f32
    %110 = vector.broadcast %cst_39 : f32 to vector<48x128xf32>
    %111 = arith.addf %110, %109 : vector<48x128xf32>
    %112 = arith.mulf %104, %111 : vector<48x128xf32>
    %c0_40 = arith.constant 0 : index
    %c0_41 = arith.constant 0 : index
    %113 = vector.load %arg3[%c0_40, %c0_41] : memref<128x32xf32, #tpu.memory_space<vmem>>, vector<128x32xf32>
    %cst_42 = arith.constant dense<0.000000e+00> : vector<48x32xf32>
    %114 = tpu.matmul %112, %113, %cst_42 {dimension_numbers = #tpu.dot_dimension_numbers<[1], [0], [0], [1], [0, 0, 1, 1], [], []>} : vector<48x128xf32>, vector<128x32xf32>, vector<48x32xf32> -> vector<48x32xf32>
    %115 = vector.broadcast %8 : vector<1x32xf32> to vector<48x32xf32>
    %116 = arith.addf %114, %115 : vector<48x32xf32>
    %117 = arith.addf %79, %116 : vector<48x32xf32>
    %c0_43 = arith.constant 0 : index
    %c0_44 = arith.constant 0 : index
    %118 = vector.load %arg7[%c0_43, %c0_44] : memref<48x32xf32, #tpu.memory_space<vmem>>, vector<48x32xf32>
    tpu.vector_store %arg7[%c0_43, %c0_44], %117 {strides = array<i32>} : memref<48x32xf32, #tpu.memory_space<vmem>>, vector<48x32xf32>,
    return
  }
  func.func @transform_0(%arg0: i32) -> (i32, i32) {
    %c0_i32 = arith.constant 0 : i32
    %c0_i32_0 = arith.constant 0 : i32
    return %arg0, %c0_i32 : i32, i32
  }
  func.func @transform_1(%arg0: i32) -> (i32, i32) {
    %c0_i32 = arith.constant 0 : i32
    %c0_i32_0 = arith.constant 0 : i32
    %c0_i32_1 = arith.constant 0 : i32
    return %c0_i32, %c0_i32_0 : i32, i32
  }
  func.func @transform_2(%arg0: i32) -> (i32, i32) {
    %c0_i32 = arith.constant 0 : i32
    %c0_i32_0 = arith.constant 0 : i32
    %c0_i32_1 = arith.constant 0 : i32
    return %c0_i32, %c0_i32_0 : i32, i32
  }
  func.func @transform_3(%arg0: i32) -> (i32, i32) {
    %c0_i32 = arith.constant 0 : i32
    %c0_i32_0 = arith.constant 0 : i32
    %c0_i32_1 = arith.constant 0 : i32
    return %c0_i32, %c0_i32_0 : i32, i32
  }
  func.func @transform_4(%arg0: i32) -> (i32, i32) {
    %c0_i32 = arith.constant 0 : i32
    %c0_i32_0 = arith.constant 0 : i32
    %c0_i32_1 = arith.constant 0 : i32
    return %c0_i32, %c0_i32_0 : i32, i32
  }
  func.func @transform_5(%arg0: i32) -> (i32, i32) {
    %c0_i32 = arith.constant 0 : i32
    %c0_i32_0 = arith.constant 0 : i32
    %c0_i32_1 = arith.constant 0 : i32
    return %c0_i32, %c0_i32_0 : i32, i32
  }
  func.func @transform_6(%arg0: i32) -> (i32, i32) {
    %c0_i32 = arith.constant 0 : i32
    %c0_i32_0 = arith.constant 0 : i32
    return %arg0, %c0_i32 : i32, i32
  }
}

</mosaic_0001>

<llo_original>
// kernel: _lambda_.1
$region0: #{_lambda_.1}
  #allocation0 [shape = 'u32[]', space=smem, size = 0x4, offset = 0x4, fixed_abs, tag = 'smem constant byte address 0x4 - core index']
  #allocation1 [shape = 'u32[144,128]{1,0:T(1,128)}', space=vmem, size = 0x12000, scoped, tag = 'internal scratch']
  %s0 = inlined_call_operand.hbm [shape: f32[48,32], index: 0, kind: input, shape index: {}]
  %s1 = inlined_call_operand.hbm [shape: f32[32,256], index: 1, kind: input, shape index: {}]
  %s2 = inlined_call_operand.hbm [shape: f32[128,32], index: 2, kind: input, shape index: {}]
  %s3 = inlined_call_operand.vmem [shape: f32[8,128], index: 3, kind: input, shape index: {}]
  %s4 = inlined_call_operand.hbm [shape: f32[192,32], index: 4, kind: input, shape index: {}]
  %s5 = inlined_call_operand.hbm [shape: f32[48,192], index: 5, kind: input, shape index: {}]
  %s6 = inlined_call_operand.hbm [shape: f32[48,32], index: 6, kind: output, shape index: {}]
  %s7 = sld [smem:[#allocation0]]
  $region54: #{_lambda_.1} parent=0
    _
  %s9 = ssub.s32 1, %s7
  %s10 = scalar_select 0, %s9, %s7
  $region1: #{_lambda_.1} parent=0
    #allocation2 [shape = 'u8[24576]{0}', space=vmem, size = 0x6000, scoped, tag = 'input window, operand 0, single buffered']
    #allocation3 [shape = 's32[1]{0}', space=sflag, size = 0x4, scoped, tag = 'scoped memory for _lambda_.1']
    #allocation4 [shape = 's32[1]{0}', space=sflag, size = 0x4, scoped, tag = 'scoped memory for _lambda_.1']
    #allocation5 [shape = 'u8[32768]{0}', space=vmem, size = 0x8000, scoped, tag = 'input window, operand 1, single buffered']
    #allocation6 [shape = 's32[1]{0}', space=sflag, size = 0x4, scoped, tag = 'scoped memory for _lambda_.1']
    #allocation7 [shape = 'u8[65536]{0}', space=vmem, size = 0x10000, scoped, tag = 'input window, operand 2, single buffered']
    #allocation8 [shape = 'u8[98304]{0}', space=vmem, size = 0x18000, scoped, tag = 'input window, operand 4, single buffered']
    #allocation9 [shape = 's32[1]{0}', space=sflag, size = 0x4, scoped, tag = 'scoped memory for _lambda_.1']
    #allocation10 [shape = 'u8[49152]{0}', space=vmem, size = 0xc000, scoped, tag = 'input window, operand 5, single buffered']
    #allocation11 [shape = 'u8[24576]{0}', space=vmem, size = 0x6000, scoped, tag = 'output window, operand 0, single buffered']
    %11 = vsyncpa [#allocation3], 0
    %12 = vsyncpa [#allocation6], 0
    %13 = vsyncpa [#allocation9], 0
    %14 = vsyncpa [#allocation4], 0
    // Predicated region
    $region2: #{_lambda_.1} parent=1 // pred_check
      _
    $region3: #{_lambda_.1} parent=1 // pred_check_branch
      %16 = sbr.rel (0) target = $region5
    $region4: #{_lambda_.1} parent=1 // pred_region
      %s18 = ssub.s32 768, 768
      %19 = vsyncadd [#allocation3], %s18
      %s20 = sshll.u32 [#allocation2], 4
      %s21 = int_to_ptr.vmem [resolvable:$true] %s20
      %26 = dma.hbm_to_vmem [thread:$0]  %s0, 768, %s21, [#allocation3], 128, 128, 8
    $region5: #{_lambda_.1} parent=1 // pred_fallthru
      _
    // Predicated region
    $region6: #{_lambda_.1} parent=1 // pred_check
      _
    $region7: #{_lambda_.1} parent=1 // pred_check_branch
      %28 = sbr.rel (0) target = $region9
    $region8: #{_lambda_.1} parent=1 // pred_region
      %s30 = ssub.s32 1024, 1024
      %31 = vsyncadd [#allocation6], %s30
      %s32 = sshll.u32 [#allocation5], 4
      %s33 = int_to_ptr.vmem [resolvable:$true] %s32
      %38 = dma.hbm_to_vmem [thread:$0]  %s1, 1024, %s33, [#allocation6], 256, 256, 16
    $region9: #{_lambda_.1} parent=1 // pred_fallthru
      _
    // Predicated region
    $region10: #{_lambda_.1} parent=1 // pred_check
      _
    $region11: #{_lambda_.1} parent=1 // pred_check_branch
      %40 = sbr.rel (0) target = $region13
    $region12: #{_lambda_.1} parent=1 // pred_region
      %s42 = ssub.s32 2048, 2048
      %43 = vsyncadd [#allocation6], %s42
      %s44 = sshll.u32 [#allocation7], 4
      %s45 = int_to_ptr.vmem [resolvable:$true] %s44
      %50 = dma.hbm_to_vmem [thread:$0]  %s2, 2048, %s45, [#allocation6], 128, 128, 8
    $region13: #{_lambda_.1} parent=1 // pred_fallthru
      _
    // Predicated region
    $region14: #{_lambda_.1} parent=1 // pred_check
      _
    $region15: #{_lambda_.1} parent=1 // pred_check_branch
      %52 = sbr.rel (0) target = $region17
    $region16: #{_lambda_.1} parent=1 // pred_region
      _
    $region17: #{_lambda_.1} parent=1 // pred_fallthru
      _
    // Predicated region
    $region18: #{_lambda_.1} parent=1 // pred_check
      _
    $region19: #{_lambda_.1} parent=1 // pred_check_branch
      %54 = sbr.rel (0) target = $region21
    $region20: #{_lambda_.1} parent=1 // pred_region
      %s56 = ssub.s32 3072, 3072
      %57 = vsyncadd [#allocation9], %s56
      %s58 = sshll.u32 [#allocation8], 4
      %s59 = int_to_ptr.vmem [resolvable:$true] %s58
      %64 = dma.hbm_to_vmem [thread:$0]  %s4, 3072, %s59, [#allocation9], 128, 128, 8
    $region21: #{_lambda_.1} parent=1 // pred_fallthru
      _
    // Predicated region
    $region22: #{_lambda_.1} parent=1 // pred_check
      _
    $region23: #{_lambda_.1} parent=1 // pred_check_branch
      %66 = sbr.rel (0) target = $region25
    $region24: #{_lambda_.1} parent=1 // pred_region
      %s68 = ssub.s32 1536, 1536
      %69 = vsyncadd [#allocation9], %s68
      %s70 = sshll.u32 [#allocation10], 4
      %s71 = int_to_ptr.vmem [resolvable:$true] %s70
      %76 = dma.hbm_to_vmem [thread:$0]  %s5, 1536, %s71, [#allocation9], 256, 256, 16
    $region25: #{_lambda_.1} parent=1 // pred_fallthru
      _
    // Predicated region
    $region26: #{_lambda_.1} parent=1 // pred_check
      _
    $region27: #{_lambda_.1} parent=1 // pred_check_branch
      %78 = sbr.rel (0) target = $region29
    $region28: #{_lambda_.1} parent=1 // pred_region
      %79 = dma.done [#allocation3], 768
    $region29: #{_lambda_.1} parent=1 // pred_fallthru
      _
    // Predicated region
    $region30: #{_lambda_.1} parent=1 // pred_check
      _
    $region31: #{_lambda_.1} parent=1 // pred_check_branch
      %81 = sbr.rel (0) target = $region33
    $region32: #{_lambda_.1} parent=1 // pred_region
      %82 = dma.done [#allocation6], 1024
    $region33: #{_lambda_.1} parent=1 // pred_fallthru
      _
    // Predicated region
    $region34: #{_lambda_.1} parent=1 // pred_check
      _
    $region35: #{_lambda_.1} parent=1 // pred_check_branch
      %84 = sbr.rel (0) target = $region37
    $region36: #{_lambda_.1} parent=1 // pred_region
      %85 = dma.done [#allocation6], 2048
    $region37: #{_lambda_.1} parent=1 // pred_fallthru
      _
    // Predicated region
    $region38: #{_lambda_.1} parent=1 // pred_check
      _
    $region39: #{_lambda_.1} parent=1 // pred_check_branch
      %87 = sbr.rel (0) target = $region41
    $region40: #{_lambda_.1} parent=1 // pred_region
      %88 = dma.done [#allocation9], 3072
    $region41: #{_lambda_.1} parent=1 // pred_fallthru
      _
    // Predicated region
    $region42: #{_lambda_.1} parent=1 // pred_check
      _
    $region43: #{_lambda_.1} parent=1 // pred_check_branch
      %90 = sbr.rel (0) target = $region45
    $region44: #{_lambda_.1} parent=1 // pred_region
      %91 = dma.done [#allocation9], 1536
    $region45: #{_lambda_.1} parent=1 // pred_fallthru
      _
    %v92 = vld [vmem:[#allocation2] sm:$0xff]
    %v93 = vld [vmem:[#allocation2 + $0x8] sm:$0xff]
    %v94 = vld [vmem:[#allocation2 + $0x10] sm:$0xff]
    %v95 = vld [vmem:[#allocation2 + $0x18] sm:$0xff]
    %v96 = vld [vmem:[#allocation2 + $0x20] sm:$0xff]
    %v97 = vld [vmem:[#allocation2 + $0x28] sm:$0xff]
    %v98 = vld [vmem:[%s3] sm:$0x1]
    %v99 = vld [vmem:[%s3 + $0x1] sm:$0x1]
    %v100 = vld [vmem:[%s3 + $0x2] sm:$0x1]
    %v101 = vld [vmem:[%s3 + $0x3] sm:$0x1]
    %v102 = vld [vmem:[%s3 + $0x4] sm:$0x1]
    %v103 = vld [vmem:[%s3 + $0x5] sm:$0x1]
    %v104 = vld [vmem:[%s3 + $0x6] sm:$0x1]
    %v105 = vld [vmem:[%s3 + $0x7] sm:$0x1]
    %v106 = vld [vmem:[#allocation5] sm:$0xff]
    %v107 = vld [vmem:[#allocation5 + $0x10] sm:$0xff]
    %v108 = vld [vmem:[#allocation5 + $0x20] sm:$0xff]
    %v109 = vld [vmem:[#allocation5 + $0x30] sm:$0xff]
    %v110 = vld [vmem:[#allocation5 + $0x8] sm:$0xff]
    %v111 = vld [vmem:[#allocation5 + $0x18] sm:$0xff]
    %v112 = vld [vmem:[#allocation5 + $0x28] sm:$0xff]
    %v113 = vld [vmem:[#allocation5 + $0x38] sm:$0xff]
    %vm114 = vcmask 261120
    %v115 = vsel %vm114, %v92, 0.0
    %116 = vadd.xlane.f32.xlu0 %v115
    %v117 = vpop.xlane.xlu0 %116
    %v118 = vsel %vm114, %v93, 0.0
    %119 = vadd.xlane.f32.xlu0 %v118
    %v120 = vpop.xlane.xlu0 %119
    %v121 = vsel %vm114, %v94, 0.0
    %122 = vadd.xlane.f32.xlu0 %v121
    %v123 = vpop.xlane.xlu0 %122
    %v124 = vsel %vm114, %v95, 0.0
    %125 = vadd.xlane.f32.xlu0 %v124
    %v126 = vpop.xlane.xlu0 %125
    %v127 = vsel %vm114, %v96, 0.0
    %128 = vadd.xlane.f32.xlu0 %v127
    %v129 = vpop.xlane.xlu0 %128
    %v130 = vsel %vm114, %v97, 0.0
    %131 = vadd.xlane.f32.xlu0 %v130
    %v132 = vpop.xlane.xlu0 %131
    %v133 = vrcp.pop 32.0
    %v134 = vmul.f32 %v117, %v133
    %v135 = vmul.f32 %v120, %v133
    %v136 = vmul.f32 %v123, %v133
    %v137 = vmul.f32 %v126, %v133
    %v138 = vmul.f32 %v129, %v133
    %v139 = vmul.f32 %v132, %v133
    %v140 = vsub.f32 %v92, %v134
    %v141 = vsub.f32 %v93, %v135
    %v142 = vsub.f32 %v94, %v136
    %v143 = vsub.f32 %v95, %v137
    %v144 = vsub.f32 %v96, %v138
    %v145 = vsub.f32 %v97, %v139
    %v146 = vmul.f32 %v140, %v140
    %v147 = vmul.f32 %v141, %v141
    %v148 = vmul.f32 %v142, %v142
    %v149 = vmul.f32 %v143, %v143
    %v150 = vmul.f32 %v144, %v144
    %v151 = vmul.f32 %v145, %v145
    %v152 = vsel %vm114, %v146, 0.0
    %153 = vadd.xlane.f32.xlu0 %v152
    %v154 = vpop.xlane.xlu0 %153
    %v155 = vsel %vm114, %v147, 0.0
    %156 = vadd.xlane.f32.xlu0 %v155
    %v157 = vpop.xlane.xlu0 %156
    %v158 = vsel %vm114, %v148, 0.0
    %159 = vadd.xlane.f32.xlu0 %v158
    %v160 = vpop.xlane.xlu0 %159
    %v161 = vsel %vm114, %v149, 0.0
    %162 = vadd.xlane.f32.xlu0 %v161
    %v163 = vpop.xlane.xlu0 %162
    %v164 = vsel %vm114, %v150, 0.0
    %165 = vadd.xlane.f32.xlu0 %v164
    %v166 = vpop.xlane.xlu0 %165
    %v167 = vsel %vm114, %v151, 0.0
    %168 = vadd.xlane.f32.xlu0 %v167
    %v169 = vpop.xlane.xlu0 %168
    %v170 = vmul.f32 %v154, %v133
    %v171 = vmul.f32 %v157, %v133
    %v172 = vmul.f32 %v160, %v133
    %v173 = vmul.f32 %v163, %v133
    %v174 = vmul.f32 %v166, %v133
    %v175 = vmul.f32 %v169, %v133
    %v176 = vadd.f32 %v170, 1e-05
    %v177 = vadd.f32 %v171, 1e-05
    %v178 = vadd.f32 %v172, 1e-05
    %v179 = vadd.f32 %v173, 1e-05
    %v180 = vadd.f32 %v174, 1e-05
    %v181 = vadd.f32 %v175, 1e-05
    %v182 = vrsqrt.pop %v176
    %v183 = vrsqrt.pop %v177
    %v184 = vrsqrt.pop %v178
    %v185 = vrsqrt.pop %v179
    %v186 = vrsqrt.pop %v180
    %v187 = vrsqrt.pop %v181
    %v188 = vmul.f32 %v140, %v182
    %v189 = vmul.f32 %v141, %v183
    %v190 = vmul.f32 %v142, %v184
    %v191 = vmul.f32 %v143, %v185
    %v192 = vmul.f32 %v144, %v186
    %v193 = vmul.f32 %v145, %v187
    %v194 = vlaneseq
    %v195 = vshrl.u32 %v194, 7
    %v196 = vsub.s32 0, %v195
    %v197 = vrot.slane %v98, %v196
    %v198 = vmul.f32 %v188, %v197
    %v199 = vmul.f32 %v189, %v197
    %v200 = vmul.f32 %v190, %v197
    %v201 = vmul.f32 %v191, %v197
    %v202 = vmul.f32 %v192, %v197
    %v203 = vmul.f32 %v193, %v197
    %v204 = vlaneseq
    %v205 = vshrl.u32 %v204, 7
    %v206 = vsub.s32 0, %v205
    %v207 = vrot.slane %v99, %v206
    %v208 = vadd.f32 %v198, %v207
    %v209 = vadd.f32 %v199, %v207
    %v210 = vadd.f32 %v200, %v207
    %v211 = vadd.f32 %v201, %v207
    %v212 = vadd.f32 %v202, %v207
    %v213 = vadd.f32 %v203, %v207
    %v214 = vlaneseq
    %v215 = vshrl.u32 %v214, 7
    %v216 = vsub.s32 0, %v215
    %v217 = vrot.slane %v102, %v216
    %v219 = vsel %vm114, %v208, 0
    %v222 = vsel %vm114, %v209, 0
    %v225 = vsel %vm114, %v210, 0
    %v228 = vsel %vm114, %v211, 0
    %v231 = vsel %vm114, %v212, 0
    %v234 = vsel %vm114, %v213, 0
    %236 = vmatprep.subr.mxu0 0.0
    %237 = vmatpush1.msra.mxu0 %v110
    %238 = vmatprep.subr.mxu0 0.0
    %239 = vmatpush1.msra.mxu0 %v111
    %240 = vmatprep.subr.mxu0 0.0
    %241 = vmatpush1.msra.mxu0 %v112
    %242 = vmatprep.subr.mxu0 0.0
    %243 = vmatpush1.msra.mxu0 %v113
    %244 = vmatprep.subr.mxu0 0.0
    %245 = vmatpush1.msra.mxu0 0.0
    %246 = vmatprep.subr.mxu0 0.0
    %247 = vmatpush1.msra.mxu0 0.0
    %248 = vmatprep.subr.mxu0 0.0
    %249 = vmatpush1.msra.mxu0 0.0
    %250 = vmatprep.subr.mxu0 0.0
    %251 = vmatpush1.msra.mxu0 0.0
    %252 = vmatprep.subr.mxu0 0.0
    %253 = vmatpush1.msra.mxu0 0.0
    %254 = vmatprep.subr.mxu0 0.0
    %255 = vmatpush1.msra.mxu0 0.0
    %256 = vmatprep.subr.mxu0 0.0
    %257 = vmatpush1.msra.mxu0 0.0
    %258 = vmatprep.subr.mxu0 0.0
    %259 = vmatpush1.msra.mxu0 0.0
    %260 = vmatprep.subr.mxu0 0.0
    %261 = vmatpush1.msra.mxu0 0.0
    %262 = vmatprep.subr.mxu0 0.0
    %263 = vmatpush1.msra.mxu0 0.0
    %264 = vmatprep.subr.mxu0 0.0
    %265 = vmatpush1.msra.mxu0 0.0
    %266 = vmatprep.subr.mxu0 0.0
    %267 = vmatpush1.msra.mxu0 0.0
    %268 = vmatprep.subr.mxu0 0.0
    %269 = vmatpush1.msra.mxu0 0.0
    %270 = vmatprep.subr.mxu0 0.0
    %271 = vmatpush1.msra.mxu0 0.0
    %272 = vmatprep.subr.mxu0 0.0
    %273 = vmatpush1.msra.mxu0 0.0
    %274 = vmatprep.subr.mxu0 0.0
    %275 = vmatpush1.msra.mxu0 0.0
    %276 = vmatprep.subr.mxu0 0.0
    %277 = vmatpush1.msra.mxu0 0.0
    %278 = vmatprep.subr.mxu0 0.0
    %279 = vmatpush1.msra.mxu0 0.0
    %280 = vmatprep.subr.mxu0 0.0
    %281 = vmatpush1.msra.mxu0 0.0
    %282 = vmatprep.subr.mxu0 0.0
    %283 = vmatpush1.msra.mxu0 0.0
    %284 = vmatprep.subr.mxu0 0.0
    %285 = vmatpush1.msra.mxu0 0.0
    %286 = vmatprep.subr.mxu0 0.0
    %287 = vmatpush1.msra.mxu0 0.0
    %288 = vmatprep.subr.mxu0 0.0
    %289 = vmatpush1.msra.mxu0 0.0
    %290 = vmatprep.subr.mxu0 0.0
    %291 = vmatpush1.msra.mxu0 0.0
    %292 = vmatprep.subr.mxu0 0.0
    %293 = vmatpush1.msra.mxu0 0.0
    %294 = vmatprep.subr.mxu0 0.0
    %295 = vmatpush1.msra.mxu0 0.0
    %296 = vmatprep.subr.mxu0 0.0
    %297 = vmatpush1.msra.mxu0 0.0
    %298 = vmatprep.subr.mxu0 0.0
    %299 = vmatpush1.msra.mxu0 0.0
    %300 = vmatprep.mubr.f32.mxu0 0.0
    %301 = vmatmul.mubr.f32.gmra.mrb[0].mxu0 %v219
    %v302 = vpop.f32.mrb[0].mxu0
    %v303 = vadd.f32 %v217, %v302
    %v304 = vpop.f32.mrb[0].mxu0
    %305 = vmatprep.mubr.f32.mxu0 0.0
    %306 = vmatmul.mubr.f32.gmra.mrb[0].mxu0 %v222
    %v307 = vpop.f32.mrb[0].mxu0
    %v308 = vadd.f32 %v217, %v307
    %v309 = vpop.f32.mrb[0].mxu0
    %310 = vmatprep.mubr.f32.mxu0 0.0
    %311 = vmatmul.mubr.f32.gmra.mrb[0].mxu0 %v225
    %v312 = vpop.f32.mrb[0].mxu0
    %v313 = vadd.f32 %v217, %v312
    %v314 = vpop.f32.mrb[0].mxu0
    %315 = vmatprep.mubr.f32.mxu0 0.0
    %316 = vmatmul.mubr.f32.gmra.mrb[0].mxu0 %v228
    %v317 = vpop.f32.mrb[0].mxu0
    %v318 = vadd.f32 %v217, %v317
    %v319 = vpop.f32.mrb[0].mxu0
    %320 = vmatprep.mubr.f32.mxu0 0.0
    %321 = vmatmul.mubr.f32.gmra.mrb[0].mxu0 %v231
    %v322 = vpop.f32.mrb[0].mxu0
    %v323 = vadd.f32 %v217, %v322
    %v324 = vpop.f32.mrb[0].mxu0
    %325 = vmatprep.mubr.f32.mxu0 0.0
    %326 = vmatmul.mubr.f32.gmra.mrb[0].mxu0 %v234
    %v327 = vpop.f32.mrb[0].mxu0
    %v328 = vadd.f32 %v217, %v327
    %v329 = vpop.f32.mrb[0].mxu0
    %330 = vdwg.mxu0
    %v331 = vld [vmem:[#allocation8] sm:$0xff]
    %v332 = vld [vmem:[#allocation8 + $0x8] sm:$0xff]
    %v333 = vld [vmem:[#allocation8 + $0x10] sm:$0xff]
    %v334 = vld [vmem:[#allocation8 + $0x18] sm:$0xff]
    %v335 = vld [vmem:[#allocation8 + $0x20] sm:$0xff]
    %v336 = vld [vmem:[#allocation8 + $0x28] sm:$0xff]
    %v337 = vld [vmem:[#allocation8 + $0x30] sm:$0xff]
    %v338 = vld [vmem:[#allocation8 + $0x38] sm:$0xff]
    %v339 = vld [vmem:[#allocation8 + $0x40] sm:$0xff]
    %v340 = vld [vmem:[#allocation8 + $0x48] sm:$0xff]
    %v341 = vld [vmem:[#allocation8 + $0x50] sm:$0xff]
    %v342 = vld [vmem:[#allocation8 + $0x58] sm:$0xff]
    %v343 = vld [vmem:[#allocation8 + $0x60] sm:$0xff]
    %v344 = vld [vmem:[#allocation8 + $0x68] sm:$0xff]
    %v345 = vld [vmem:[#allocation8 + $0x70] sm:$0xff]
    %v346 = vld [vmem:[#allocation8 + $0x78] sm:$0xff]
    %v347 = vld [vmem:[#allocation8 + $0x80] sm:$0xff]
    %v348 = vld [vmem:[#allocation8 + $0x88] sm:$0xff]
    %v349 = vld [vmem:[#allocation8 + $0x90] sm:$0xff]
    %v350 = vld [vmem:[#allocation8 + $0x98] sm:$0xff]
    %v351 = vld [vmem:[#allocation8 + $0xa0] sm:$0xff]
    %v352 = vld [vmem:[#allocation8 + $0xa8] sm:$0xff]
    %v353 = vld [vmem:[#allocation8 + $0xb0] sm:$0xff]
    %v354 = vld [vmem:[#allocation8 + $0xb8] sm:$0xff]
    %379 = vrot.lane.b32.xlu0 %v331, 32
    %v380 = vpop.permute.xlu0 %379
    %381 = vrot.lane.b32.xlu0 %v332, 32
    %v382 = vpop.permute.xlu0 %381
    %383 = vrot.lane.b32.xlu0 %v333, 32
    %v384 = vpop.permute.xlu0 %383
    %385 = vrot.lane.b32.xlu0 %v334, 32
    %v386 = vpop.permute.xlu0 %385
    %387 = vrot.lane.b32.xlu0 %v335, 32
    %v388 = vpop.permute.xlu0 %387
    %389 = vrot.lane.b32.xlu0 %v336, 32
    %v390 = vpop.permute.xlu0 %389
    %391 = vrot.lane.b32.xlu0 %v337, 32
    %v392 = vpop.permute.xlu0 %391
    %393 = vrot.lane.b32.xlu0 %v338, 32
    %v394 = vpop.permute.xlu0 %393
    %395 = vrot.lane.b32.xlu0 %v339, 32
    %v396 = vpop.permute.xlu0 %395
    %397 = vrot.lane.b32.xlu0 %v340, 32
    %v398 = vpop.permute.xlu0 %397
    %399 = vrot.lane.b32.xlu0 %v341, 32
    %v400 = vpop.permute.xlu0 %399
    %401 = vrot.lane.b32.xlu0 %v342, 32
    %v402 = vpop.permute.xlu0 %401
    %403 = vrot.lane.b32.xlu0 %v343, 32
    %v404 = vpop.permute.xlu0 %403
    %405 = vrot.lane.b32.xlu0 %v344, 32
    %v406 = vpop.permute.xlu0 %405
    %407 = vrot.lane.b32.xlu0 %v345, 32
    %v408 = vpop.permute.xlu0 %407
    %409 = vrot.lane.b32.xlu0 %v346, 32
    %v410 = vpop.permute.xlu0 %409
    %411 = vrot.lane.b32.xlu0 %v347, 32
    %v412 = vpop.permute.xlu0 %411
    %413 = vrot.lane.b32.xlu0 %v348, 32
    %v414 = vpop.permute.xlu0 %413
    %415 = vrot.lane.b32.xlu0 %v349, 32
    %v416 = vpop.permute.xlu0 %415
    %417 = vrot.lane.b32.xlu0 %v350, 32
    %v418 = vpop.permute.xlu0 %417
    %419 = vrot.lane.b32.xlu0 %v351, 32
    %v420 = vpop.permute.xlu0 %419
    %421 = vrot.lane.b32.xlu0 %v352, 32
    %v422 = vpop.permute.xlu0 %421
    %423 = vrot.lane.b32.xlu0 %v353, 32
    %v424 = vpop.permute.xlu0 %423
    %425 = vrot.lane.b32.xlu0 %v354, 32
    %v426 = vpop.permute.xlu0 %425
    %v451 = vmul.f32 %v303, %v380
    %v452 = vmul.f32 %v308, %v382
    %v453 = vmul.f32 %v313, %v384
    %v454 = vmul.f32 %v318, %v386
    %v455 = vmul.f32 %v323, %v388
    %v456 = vmul.f32 %v328, %v390
    %v457 = vmul.f32 %v303, %v392
    %v458 = vmul.f32 %v308, %v394
    %v459 = vmul.f32 %v313, %v396
    %v460 = vmul.f32 %v318, %v398
    %v461 = vmul.f32 %v323, %v400
    %v462 = vmul.f32 %v328, %v402
    %v463 = vmul.f32 %v303, %v404
    %v464 = vmul.f32 %v308, %v406
    %v465 = vmul.f32 %v313, %v408
    %v466 = vmul.f32 %v318, %v410
    %v467 = vmul.f32 %v323, %v412
    %v468 = vmul.f32 %v328, %v414
    %v469 = vmul.f32 %v303, %v416
    %v470 = vmul.f32 %v308, %v418
    %v471 = vmul.f32 %v313, %v420
    %v472 = vmul.f32 %v318, %v422
    %v473 = vmul.f32 %v323, %v424
    %v474 = vmul.f32 %v328, %v426
    %475 = vrot.lane.b32.xlu0 %v331, 64
    %v476 = vpop.permute.xlu0 %475
    %477 = vrot.lane.b32.xlu0 %v332, 64
    %v478 = vpop.permute.xlu0 %477
    %479 = vrot.lane.b32.xlu0 %v333, 64
    %v480 = vpop.permute.xlu0 %479
    %481 = vrot.lane.b32.xlu0 %v334, 64
    %v482 = vpop.permute.xlu0 %481
    %483 = vrot.lane.b32.xlu0 %v335, 64
    %v484 = vpop.permute.xlu0 %483
    %485 = vrot.lane.b32.xlu0 %v336, 64
    %v486 = vpop.permute.xlu0 %485
    %487 = vrot.lane.b32.xlu0 %v337, 64
    %v488 = vpop.permute.xlu0 %487
    %489 = vrot.lane.b32.xlu0 %v338, 64
    %v490 = vpop.permute.xlu0 %489
    %491 = vrot.lane.b32.xlu0 %v339, 64
    %v492 = vpop.permute.xlu0 %491
    %493 = vrot.lane.b32.xlu0 %v340, 64
    %v494 = vpop.permute.xlu0 %493
    %495 = vrot.lane.b32.xlu0 %v341, 64
    %v496 = vpop.permute.xlu0 %495
    %497 = vrot.lane.b32.xlu0 %v342, 64
    %v498 = vpop.permute.xlu0 %497
    %499 = vrot.lane.b32.xlu0 %v343, 64
    %v500 = vpop.permute.xlu0 %499
    %501 = vrot.lane.b32.xlu0 %v344, 64
    %v502 = vpop.permute.xlu0 %501
    %503 = vrot.lane.b32.xlu0 %v345, 64
    %v504 = vpop.permute.xlu0 %503
    %505 = vrot.lane.b32.xlu0 %v346, 64
    %v506 = vpop.permute.xlu0 %505
    %507 = vrot.lane.b32.xlu0 %v347, 64
    %v508 = vpop.permute.xlu0 %507
    %509 = vrot.lane.b32.xlu0 %v348, 64
    %v510 = vpop.permute.xlu0 %509
    %511 = vrot.lane.b32.xlu0 %v349, 64
    %v512 = vpop.permute.xlu0 %511
    %513 = vrot.lane.b32.xlu0 %v350, 64
    %v514 = vpop.permute.xlu0 %513
    %515 = vrot.lane.b32.xlu0 %v351, 64
    %v516 = vpop.permute.xlu0 %515
    %517 = vrot.lane.b32.xlu0 %v352, 64
    %v518 = vpop.permute.xlu0 %517
    %519 = vrot.lane.b32.xlu0 %v353, 64
    %v520 = vpop.permute.xlu0 %519
    %521 = vrot.lane.b32.xlu0 %v354, 64
    %v522 = vpop.permute.xlu0 %521
    %v547 = vmul.f32 %v303, %v476
    %v548 = vmul.f32 %v308, %v478
    %v549 = vmul.f32 %v313, %v480
    %v550 = vmul.f32 %v318, %v482
    %v551 = vmul.f32 %v323, %v484
    %v552 = vmul.f32 %v328, %v486
    %v553 = vmul.f32 %v303, %v488
    %v554 = vmul.f32 %v308, %v490
    %v555 = vmul.f32 %v313, %v492
    %v556 = vmul.f32 %v318, %v494
    %v557 = vmul.f32 %v323, %v496
    %v558 = vmul.f32 %v328, %v498
    %v559 = vmul.f32 %v303, %v500
    %v560 = vmul.f32 %v308, %v502
    %v561 = vmul.f32 %v313, %v504
    %v562 = vmul.f32 %v318, %v506
    %v563 = vmul.f32 %v323, %v508
    %v564 = vmul.f32 %v328, %v510
    %v565 = vmul.f32 %v303, %v512
    %v566 = vmul.f32 %v308, %v514
    %v567 = vmul.f32 %v313, %v516
    %v568 = vmul.f32 %v318, %v518
    %v569 = vmul.f32 %v323, %v520
    %v570 = vmul.f32 %v328, %v522
    %v571 = vld [vmem:[#allocation10] sm:$0xff]
    %v572 = vld [vmem:[#allocation10 + $0x8] sm:$0xff]
    %v573 = vld [vmem:[#allocation10 + $0x10] sm:$0xff]
    %v574 = vld [vmem:[#allocation10 + $0x18] sm:$0xff]
    %v575 = vld [vmem:[#allocation10 + $0x20] sm:$0xff]
    %v576 = vld [vmem:[#allocation10 + $0x28] sm:$0xff]
    %v577 = vld [vmem:[#allocation10 + $0x30] sm:$0xff]
    %v578 = vld [vmem:[#allocation10 + $0x38] sm:$0xff]
    %v579 = vld [vmem:[#allocation10 + $0x40] sm:$0xff]
    %v580 = vld [vmem:[#allocation10 + $0x48] sm:$0xff]
    %v581 = vld [vmem:[#allocation10 + $0x50] sm:$0xff]
    %v582 = vld [vmem:[#allocation10 + $0x58] sm:$0xff]
    %607 = vrot.lane.b32.xlu0 %v451, 96
    %v608 = vpop.permute.xlu0 %607
    %609 = vrot.lane.b32.xlu0 %v452, 96
    %v610 = vpop.permute.xlu0 %609
    %611 = vrot.lane.b32.xlu0 %v453, 96
    %v612 = vpop.permute.xlu0 %611
    %613 = vrot.lane.b32.xlu0 %v454, 96
    %v614 = vpop.permute.xlu0 %613
    %615 = vrot.lane.b32.xlu0 %v455, 96
    %v616 = vpop.permute.xlu0 %615
    %617 = vrot.lane.b32.xlu0 %v456, 96
    %v618 = vpop.permute.xlu0 %617
    %619 = vrot.lane.b32.xlu0 %v457, 96
    %v620 = vpop.permute.xlu0 %619
    %621 = vrot.lane.b32.xlu0 %v458, 96
    %v622 = vpop.permute.xlu0 %621
    %623 = vrot.lane.b32.xlu0 %v459, 96
    %v624 = vpop.permute.xlu0 %623
    %625 = vrot.lane.b32.xlu0 %v460, 96
    %v626 = vpop.permute.xlu0 %625
    %627 = vrot.lane.b32.xlu0 %v461, 96
    %v628 = vpop.permute.xlu0 %627
    %629 = vrot.lane.b32.xlu0 %v462, 96
    %v630 = vpop.permute.xlu0 %629
    %631 = vrot.lane.b32.xlu0 %v463, 96
    %v632 = vpop.permute.xlu0 %631
    %633 = vrot.lane.b32.xlu0 %v464, 96
    %v634 = vpop.permute.xlu0 %633
    %635 = vrot.lane.b32.xlu0 %v465, 96
    %v636 = vpop.permute.xlu0 %635
    %637 = vrot.lane.b32.xlu0 %v466, 96
    %v638 = vpop.permute.xlu0 %637
    %639 = vrot.lane.b32.xlu0 %v467, 96
    %v640 = vpop.permute.xlu0 %639
    %641 = vrot.lane.b32.xlu0 %v468, 96
    %v642 = vpop.permute.xlu0 %641
    %643 = vrot.lane.b32.xlu0 %v469, 96
    %v644 = vpop.permute.xlu0 %643
    %645 = vrot.lane.b32.xlu0 %v470, 96
    %v646 = vpop.permute.xlu0 %645
    %647 = vrot.lane.b32.xlu0 %v471, 96
    %v648 = vpop.permute.xlu0 %647
    %649 = vrot.lane.b32.xlu0 %v472, 96
    %v650 = vpop.permute.xlu0 %649
    %651 = vrot.lane.b32.xlu0 %v473, 96
    %v652 = vpop.permute.xlu0 %651
    %653 = vrot.lane.b32.xlu0 %v474, 96
    %v654 = vpop.permute.xlu0 %653
    %v656 = vsel %vm114, %v303, 0
    %v659 = vsel %vm114, %v308, 0
    %v662 = vsel %vm114, %v313, 0
    %v665 = vsel %vm114, %v318, 0
    %v668 = vsel %vm114, %v323, 0
    %v671 = vsel %vm114, %v328, 0
    %v673 = vsel %vm114, %v608, 0
    %v675 = vsel %vm114, %v610, 0
    %v677 = vsel %vm114, %v612, 0
    %v679 = vsel %vm114, %v614, 0
    %v681 = vsel %vm114, %v616, 0
    %v683 = vsel %vm114, %v618, 0
    %v685 = vsel %vm114, %v620, 0
    %v687 = vsel %vm114, %v622, 0
    %v689 = vsel %vm114, %v624, 0
    %v691 = vsel %vm114, %v626, 0
    %v693 = vsel %vm114, %v628, 0
    %v695 = vsel %vm114, %v630, 0
    %v697 = vsel %vm114, %v632, 0
    %v699 = vsel %vm114, %v634, 0
    %v701 = vsel %vm114, %v636, 0
    %v703 = vsel %vm114, %v638, 0
    %v705 = vsel %vm114, %v640, 0
    %v707 = vsel %vm114, %v642, 0
    %v709 = vsel %vm114, %v644, 0
    %v711 = vsel %vm114, %v646, 0
    %v713 = vsel %vm114, %v648, 0
    %v715 = vsel %vm114, %v650, 0
    %v717 = vsel %vm114, %v652, 0
    %v719 = vsel %vm114, %v654, 0
    %721 = vmatprep.subr.mxu0 0.0
    %722 = vmatpush1.xpose.msra.mxu0 %v673
    %723 = vmatprep.subr.mxu0 0.0
    %724 = vmatpush1.xpose.msra.mxu0 %v675
    %725 = vmatprep.subr.mxu0 0.0
    %726 = vmatpush1.xpose.msra.mxu0 %v677
    %727 = vmatprep.subr.mxu0 0.0
    %728 = vmatpush1.xpose.msra.mxu0 %v679
    %729 = vmatprep.subr.mxu0 0.0
    %730 = vmatpush1.xpose.msra.mxu0 %v681
    %731 = vmatprep.subr.mxu0 0.0
    %732 = vmatpush1.xpose.msra.mxu0 %v683
    %733 = vmatprep.subr.mxu0 0.0
    %734 = vmatpush1.xpose.msra.mxu0 %v685
    %735 = vmatprep.subr.mxu0 0.0
    %736 = vmatpush1.xpose.msra.mxu0 %v687
    %737 = vmatprep.subr.mxu0 0.0
    %738 = vmatpush1.xpose.msra.mxu0 %v689
    %739 = vmatprep.subr.mxu0 0.0
    %740 = vmatpush1.xpose.msra.mxu0 %v691
    %741 = vmatprep.subr.mxu0 0.0
    %742 = vmatpush1.xpose.msra.mxu0 %v693
    %743 = vmatprep.subr.mxu0 0.0
    %744 = vmatpush1.xpose.msra.mxu0 %v695
    %745 = vmatprep.subr.mxu0 0.0
    %746 = vmatpush1.xpose.msra.mxu0 %v697
    %747 = vmatprep.subr.mxu0 0.0
    %748 = vmatpush1.xpose.msra.mxu0 %v699
    %749 = vmatprep.subr.mxu0 0.0
    %750 = vmatpush1.xpose.msra.mxu0 %v701
    %751 = vmatprep.subr.mxu0 0.0
    %752 = vmatpush1.xpose.msra.mxu0 %v703
    %753 = vmatprep.subr.mxu0 0.0
    %754 = vmatpush1.xpose.msra.mxu0 %v705
    %755 = vmatprep.subr.mxu0 0.0
    %756 = vmatpush1.xpose.msra.mxu0 %v707
    %757 = vmatprep.subr.mxu0 0.0
    %758 = vmatpush1.xpose.msra.mxu0 %v709
    %759 = vmatprep.subr.mxu0 0.0
    %760 = vmatpush1.xpose.msra.mxu0 %v711
    %761 = vmatprep.subr.mxu0 0.0
    %762 = vmatpush1.xpose.msra.mxu0 %v713
    %763 = vmatprep.subr.mxu0 0.0
    %764 = vmatpush1.xpose.msra.mxu0 %v715
    %765 = vmatprep.subr.mxu0 0.0
    %766 = vmatpush1.xpose.msra.mxu0 %v717
    %767 = vmatprep.subr.mxu0 0.0
    %768 = vmatpush1.xpose.msra.mxu0 %v719
    %769 = vmatprep.subr.mxu0 0.0
    %770 = vmatpush1.xpose.msra.mxu0 0.0
    %771 = vmatprep.subr.mxu0 0.0
    %772 = vmatpush1.xpose.msra.mxu0 0.0
    %773 = vmatprep.subr.mxu0 0.0
    %774 = vmatpush1.xpose.msra.mxu0 0.0
    %775 = vmatprep.subr.mxu0 0.0
    %776 = vmatpush1.xpose.msra.mxu0 0.0
    %777 = vmatprep.subr.mxu0 0.0
    %778 = vmatpush1.xpose.msra.mxu0 0.0
    %779 = vmatprep.subr.mxu0 0.0
    %780 = vmatpush1.xpose.msra.mxu0 0.0
    %781 = vmatprep.subr.mxu0 0.0
    %782 = vmatpush1.xpose.msra.mxu0 0.0
    %783 = vmatprep.subr.mxu0 0.0
    %784 = vmatpush1.xpose.msra.mxu0 0.0
    %785 = vmatprep.mubr.f32.mxu0 0.0
    %786 = vmatmul.mubr.f32.gmra.mrb[0].mxu0 %v656
    %v787 = vpop.f32.mrb[0].mxu0
    %v788 = vadd.f32 %v571, %v787
    %v789 = vpop.f32.mrb[0].mxu0
    %v790 = vadd.f32 %v572, %v789
    %791 = vmatprep.mubr.f32.mxu0 0.0
    %792 = vmatmul.mubr.f32.gmra.mrb[0].mxu0 %v659
    %v793 = vpop.f32.mrb[0].mxu0
    %v794 = vadd.f32 %v573, %v793
    %v795 = vpop.f32.mrb[0].mxu0
    %v796 = vadd.f32 %v574, %v795
    %797 = vmatprep.mubr.f32.mxu0 0.0
    %798 = vmatmul.mubr.f32.gmra.mrb[0].mxu0 %v662
    %v799 = vpop.f32.mrb[0].mxu0
    %v800 = vadd.f32 %v575, %v799
    %v801 = vpop.f32.mrb[0].mxu0
    %v802 = vadd.f32 %v576, %v801
    %803 = vmatprep.mubr.f32.mxu0 0.0
    %804 = vmatmul.mubr.f32.gmra.mrb[0].mxu0 %v665
    %v805 = vpop.f32.mrb[0].mxu0
    %v806 = vadd.f32 %v577, %v805
    %v807 = vpop.f32.mrb[0].mxu0
    %v808 = vadd.f32 %v578, %v807
    %809 = vmatprep.mubr.f32.mxu0 0.0
    %810 = vmatmul.mubr.f32.gmra.mrb[0].mxu0 %v668
    %v811 = vpop.f32.mrb[0].mxu0
    %v812 = vadd.f32 %v579, %v811
    %v813 = vpop.f32.mrb[0].mxu0
    %v814 = vadd.f32 %v580, %v813
    %815 = vmatprep.mubr.f32.mxu0 0.0
    %816 = vmatmul.mubr.f32.gmra.mrb[0].mxu0 %v671
    %v817 = vpop.f32.mrb[0].mxu0
    %v818 = vadd.f32 %v581, %v817
    %v819 = vpop.f32.mrb[0].mxu0
    %v820 = vadd.f32 %v582, %v819
    %821 = vdwg.mxu0
    %vm822 = vcmask 392192
    %v823 = vsel %vm822, %v788, -inf
    %824 = vmax.xlane.f32.xlu0 %v823
    %v825 = vpop.xlane.xlu0 %824
    %v826 = vsel %vm822, %v794, -inf
    %827 = vmax.xlane.f32.xlu0 %v826
    %v828 = vpop.xlane.xlu0 %827
    %v829 = vsel %vm822, %v800, -inf
    %830 = vmax.xlane.f32.xlu0 %v829
    %v831 = vpop.xlane.xlu0 %830
    %v832 = vsel %vm822, %v806, -inf
    %833 = vmax.xlane.f32.xlu0 %v832
    %v834 = vpop.xlane.xlu0 %833
    %v835 = vsel %vm822, %v812, -inf
    %836 = vmax.xlane.f32.xlu0 %v835
    %v837 = vpop.xlane.xlu0 %836
    %v838 = vsel %vm822, %v818, -inf
    %839 = vmax.xlane.f32.xlu0 %v838
    %v840 = vpop.xlane.xlu0 %839
    %v841 = vsub.f32 %v788, %v825
    %v842 = vsub.f32 %v794, %v828
    %v843 = vsub.f32 %v800, %v831
    %v844 = vsub.f32 %v806, %v834
    %v845 = vsub.f32 %v812, %v837
    %v846 = vsub.f32 %v818, %v840
    %v847 = vmul.f32 %v841, 1.442695
    %v848 = vpow.pop %v847
    %v849 = vmul.f32 %v842, 1.442695
    %v850 = vpow.pop %v849
    %v851 = vmul.f32 %v843, 1.442695
    %v852 = vpow.pop %v851
    %v853 = vmul.f32 %v844, 1.442695
    %v854 = vpow.pop %v853
    %v855 = vmul.f32 %v845, 1.442695
    %v856 = vpow.pop %v855
    %v857 = vmul.f32 %v846, 1.442695
    %v858 = vpow.pop %v857
    %vm859 = vcmask 785792
    %v860 = vsel %vm859, %v788, -inf
    %861 = vmax.xlane.f32.xlu0 %v860
    %v862 = vpop.xlane.xlu0 %861
    %v863 = vsel %vm859, %v794, -inf
    %864 = vmax.xlane.f32.xlu0 %v863
    %v865 = vpop.xlane.xlu0 %864
    %v866 = vsel %vm859, %v800, -inf
    %867 = vmax.xlane.f32.xlu0 %v866
    %v868 = vpop.xlane.xlu0 %867
    %v869 = vsel %vm859, %v806, -inf
    %870 = vmax.xlane.f32.xlu0 %v869
    %v871 = vpop.xlane.xlu0 %870
    %v872 = vsel %vm859, %v812, -inf
    %873 = vmax.xlane.f32.xlu0 %v872
    %v874 = vpop.xlane.xlu0 %873
    %v875 = vsel %vm859, %v818, -inf
    %876 = vmax.xlane.f32.xlu0 %v875
    %v877 = vpop.xlane.xlu0 %876
    %v878 = vsub.f32 %v788, %v862
    %v879 = vsub.f32 %v794, %v865
    %v880 = vsub.f32 %v800, %v868
    %v881 = vsub.f32 %v806, %v871
    %v882 = vsub.f32 %v812, %v874
    %v883 = vsub.f32 %v818, %v877
    %v884 = vmul.f32 %v878, 1.442695
    %v885 = vpow.pop %v884
    %v886 = vmul.f32 %v879, 1.442695
    %v887 = vpow.pop %v886
    %v888 = vmul.f32 %v880, 1.442695
    %v889 = vpow.pop %v888
    %v890 = vmul.f32 %v881, 1.442695
    %v891 = vpow.pop %v890
    %v892 = vmul.f32 %v882, 1.442695
    %v893 = vpow.pop %v892
    %v894 = vmul.f32 %v883, 1.442695
    %v895 = vpow.pop %v894
    %vm896 = vcmask 1048320
    %v897 = vsel %vm896, %v788, -inf
    %vm898 = vcmask 130048
    %v899 = vsel %vm898, %v790, -inf
    %v900 = vmax.f32 %v897, %v899
    %901 = vmax.xlane.f32.xlu0 %v900
    %v902 = vpop.xlane.xlu0 %901
    %v903 = vsel %vm896, %v794, -inf
    %v904 = vsel %vm898, %v796, -inf
    %v905 = vmax.f32 %v903, %v904
    %906 = vmax.xlane.f32.xlu0 %v905
    %v907 = vpop.xlane.xlu0 %906
    %v908 = vsel %vm896, %v800, -inf
    %v909 = vsel %vm898, %v802, -inf
    %v910 = vmax.f32 %v908, %v909
    %911 = vmax.xlane.f32.xlu0 %v910
    %v912 = vpop.xlane.xlu0 %911
    %v913 = vsel %vm896, %v806, -inf
    %v914 = vsel %vm898, %v808, -inf
    %v915 = vmax.f32 %v913, %v914
    %916 = vmax.xlane.f32.xlu0 %v915
    %v917 = vpop.xlane.xlu0 %916
    %v918 = vsel %vm896, %v812, -inf
    %v919 = vsel %vm898, %v814, -inf
    %v920 = vmax.f32 %v918, %v919
    %921 = vmax.xlane.f32.xlu0 %v920
    %v922 = vpop.xlane.xlu0 %921
    %v923 = vsel %vm896, %v818, -inf
    %v924 = vsel %vm898, %v820, -inf
    %v925 = vmax.f32 %v923, %v924
    %926 = vmax.xlane.f32.xlu0 %v925
    %v927 = vpop.xlane.xlu0 %926
    %v928 = vsub.f32 %v788, %v902
    %v929 = vsub.f32 %v790, %v902
    %v930 = vsub.f32 %v794, %v907
    %v931 = vsub.f32 %v796, %v907
    %v932 = vsub.f32 %v800, %v912
    %v933 = vsub.f32 %v802, %v912
    %v934 = vsub.f32 %v806, %v917
    %v935 = vsub.f32 %v808, %v917
    %v936 = vsub.f32 %v812, %v922
    %v937 = vsub.f32 %v814, %v922
    %v938 = vsub.f32 %v818, %v927
    %v939 = vsub.f32 %v820, %v927
    %v940 = vmul.f32 %v928, 1.442695
    %v941 = vpow.pop %v940
    %v942 = vmul.f32 %v929, 1.442695
    %v943 = vpow.pop %v942
    %v944 = vmul.f32 %v930, 1.442695
    %v945 = vpow.pop %v944
    %v946 = vmul.f32 %v931, 1.442695
    %v947 = vpow.pop %v946
    %v948 = vmul.f32 %v932, 1.442695
    %v949 = vpow.pop %v948
    %v950 = vmul.f32 %v933, 1.442695
    %v951 = vpow.pop %v950
    %v952 = vmul.f32 %v934, 1.442695
    %v953 = vpow.pop %v952
    %v954 = vmul.f32 %v935, 1.442695
    %v955 = vpow.pop %v954
    %v956 = vmul.f32 %v936, 1.442695
    %v957 = vpow.pop %v956
    %v958 = vmul.f32 %v937, 1.442695
    %v959 = vpow.pop %v958
    %v960 = vmul.f32 %v938, 1.442695
    %v961 = vpow.pop %v960
    %v962 = vmul.f32 %v939, 1.442695
    %v963 = vpow.pop %v962
    %vm964 = vcmask 523392
    %v965 = vsel %vm964, %v790, -inf
    %966 = vmax.xlane.f32.xlu0 %v965
    %v967 = vpop.xlane.xlu0 %966
    %v968 = vsel %vm964, %v796, -inf
    %969 = vmax.xlane.f32.xlu0 %v968
    %v970 = vpop.xlane.xlu0 %969
    %v971 = vsel %vm964, %v802, -inf
    %972 = vmax.xlane.f32.xlu0 %v971
    %v973 = vpop.xlane.xlu0 %972
    %v974 = vsel %vm964, %v808, -inf
    %975 = vmax.xlane.f32.xlu0 %v974
    %v976 = vpop.xlane.xlu0 %975
    %v977 = vsel %vm964, %v814, -inf
    %978 = vmax.xlane.f32.xlu0 %v977
    %v979 = vpop.xlane.xlu0 %978
    %v980 = vsel %vm964, %v820, -inf
    %981 = vmax.xlane.f32.xlu0 %v980
    %v982 = vpop.xlane.xlu0 %981
    %v983 = vsub.f32 %v790, %v967
    %v984 = vsub.f32 %v796, %v970
    %v985 = vsub.f32 %v802, %v973
    %v986 = vsub.f32 %v808, %v976
    %v987 = vsub.f32 %v814, %v979
    %v988 = vsub.f32 %v820, %v982
    %v989 = vmul.f32 %v983, 1.442695
    %v990 = vpow.pop %v989
    %v991 = vmul.f32 %v984, 1.442695
    %v992 = vpow.pop %v991
    %v993 = vmul.f32 %v985, 1.442695
    %v994 = vpow.pop %v993
    %v995 = vmul.f32 %v986, 1.442695
    %v996 = vpow.pop %v995
    %v997 = vmul.f32 %v987, 1.442695
    %v998 = vpow.pop %v997
    %v999 = vmul.f32 %v988, 1.442695
    %v1000 = vpow.pop %v999
    %v1001 = vsel %vm822, %v848, %v885
    %v1002 = vsel %vm822, %v850, %v887
    %v1003 = vsel %vm822, %v852, %v889
    %v1004 = vsel %vm822, %v854, %v891
    %v1005 = vsel %vm822, %v856, %v893
    %v1006 = vsel %vm822, %v858, %v895
    %vm1007 = vcmask 785408
    %v1008 = vsel %vm1007, %v1001, %v941
    %v1009 = vsel %vm1007, %v1002, %v945
    %v1010 = vsel %vm1007, %v1003, %v949
    %v1011 = vsel %vm1007, %v1004, %v953
    %v1012 = vsel %vm1007, %v1005, %v957
    %v1013 = vsel %vm1007, %v1006, %v961
    %v1014 = vsel %vm898, %v943, %v990
    %v1015 = vsel %vm898, %v947, %v992
    %v1016 = vsel %vm898, %v951, %v994
    %v1017 = vsel %vm898, %v955, %v996
    %v1018 = vsel %vm898, %v959, %v998
    %v1019 = vsel %vm898, %v963, %v1000
    %1044 = vrot.lane.b32.xlu0 %v547, 64
    %v1045 = vpop.permute.xlu0 %1044
    %1046 = vrot.lane.b32.xlu0 %v548, 64
    %v1047 = vpop.permute.xlu0 %1046
    %1048 = vrot.lane.b32.xlu0 %v549, 64
    %v1049 = vpop.permute.xlu0 %1048
    %1050 = vrot.lane.b32.xlu0 %v550, 64
    %v1051 = vpop.permute.xlu0 %1050
    %1052 = vrot.lane.b32.xlu0 %v551, 64
    %v1053 = vpop.permute.xlu0 %1052
    %1054 = vrot.lane.b32.xlu0 %v552, 64
    %v1055 = vpop.permute.xlu0 %1054
    %1056 = vrot.lane.b32.xlu0 %v553, 64
    %v1057 = vpop.permute.xlu0 %1056
    %1058 = vrot.lane.b32.xlu0 %v554, 64
    %v1059 = vpop.permute.xlu0 %1058
    %1060 = vrot.lane.b32.xlu0 %v555, 64
    %v1061 = vpop.permute.xlu0 %1060
    %1062 = vrot.lane.b32.xlu0 %v556, 64
    %v1063 = vpop.permute.xlu0 %1062
    %1064 = vrot.lane.b32.xlu0 %v557, 64
    %v1065 = vpop.permute.xlu0 %1064
    %1066 = vrot.lane.b32.xlu0 %v558, 64
    %v1067 = vpop.permute.xlu0 %1066
    %1068 = vrot.lane.b32.xlu0 %v559, 64
    %v1069 = vpop.permute.xlu0 %1068
    %1070 = vrot.lane.b32.xlu0 %v560, 64
    %v1071 = vpop.permute.xlu0 %1070
    %1072 = vrot.lane.b32.xlu0 %v561, 64
    %v1073 = vpop.permute.xlu0 %1072
    %1074 = vrot.lane.b32.xlu0 %v562, 64
    %v1075 = vpop.permute.xlu0 %1074
    %1076 = vrot.lane.b32.xlu0 %v563, 64
    %v1077 = vpop.permute.xlu0 %1076
    %1078 = vrot.lane.b32.xlu0 %v564, 64
    %v1079 = vpop.permute.xlu0 %1078
    %1080 = vrot.lane.b32.xlu0 %v565, 64
    %v1081 = vpop.permute.xlu0 %1080
    %1082 = vrot.lane.b32.xlu0 %v566, 64
    %v1083 = vpop.permute.xlu0 %1082
    %1084 = vrot.lane.b32.xlu0 %v567, 64
    %v1085 = vpop.permute.xlu0 %1084
    %1086 = vrot.lane.b32.xlu0 %v568, 64
    %v1087 = vpop.permute.xlu0 %1086
    %1088 = vrot.lane.b32.xlu0 %v569, 64
    %v1089 = vpop.permute.xlu0 %1088
    %1090 = vrot.lane.b32.xlu0 %v570, 64
    %v1091 = vpop.permute.xlu0 %1090
    %vm1116 = vcmask 523264
    %v1118 = vsel %vm1116, %v1014, 0
    %v1121 = vsel %vm1116, %v1015, 0
    %v1124 = vsel %vm1116, %v1016, 0
    %v1127 = vsel %vm1116, %v1017, 0
    %v1130 = vsel %vm1116, %v1018, 0
    %v1133 = vsel %vm1116, %v1019, 0
    %1135 = vmatprep.subr.mxu0 0.0
    %1136 = vmatpush1.msra.mxu0 %v1045
    %1137 = vmatprep.subr.mxu0 0.0
    %1138 = vmatpush1.msra.mxu0 %v1047
    %1139 = vmatprep.subr.mxu0 0.0
    %1140 = vmatpush1.msra.mxu0 %v1049
    %1141 = vmatprep.subr.mxu0 0.0
    %1142 = vmatpush1.msra.mxu0 %v1051
    %1143 = vmatprep.subr.mxu0 0.0
    %1144 = vmatpush1.msra.mxu0 %v1053
    %1145 = vmatprep.subr.mxu0 0.0
    %1146 = vmatpush1.msra.mxu0 %v1055
    %1147 = vmatprep.subr.mxu0 0.0
    %1148 = vmatpush1.msra.mxu0 %v1057
    %1149 = vmatprep.subr.mxu0 0.0
    %1150 = vmatpush1.msra.mxu0 %v1059
    %1151 = vmatprep.subr.mxu0 0.0
    %1152 = vmatpush1.msra.mxu0 %v1061
    %1153 = vmatprep.subr.mxu0 0.0
    %1154 = vmatpush1.msra.mxu0 %v1063
    %1155 = vmatprep.subr.mxu0 0.0
    %1156 = vmatpush1.msra.mxu0 %v1065
    %1157 = vmatprep.subr.mxu0 0.0
    %1158 = vmatpush1.msra.mxu0 %v1067
    %1159 = vmatprep.subr.mxu0 0.0
    %1160 = vmatpush1.msra.mxu0 %v1069
    %1161 = vmatprep.subr.mxu0 0.0
    %1162 = vmatpush1.msra.mxu0 %v1071
    %1163 = vmatprep.subr.mxu0 0.0
    %1164 = vmatpush1.msra.mxu0 %v1073
    %1165 = vmatprep.subr.mxu0 0.0
    %1166 = vmatpush1.msra.mxu0 %v1075
    %1167 = vmatprep.subr.mxu0 0.0
    %1168 = vmatpush1.msra.mxu0 %v1077
    %1169 = vmatprep.subr.mxu0 0.0
    %1170 = vmatpush1.msra.mxu0 %v1079
    %1171 = vmatprep.subr.mxu0 0.0
    %1172 = vmatpush1.msra.mxu0 %v1081
    %1173 = vmatprep.subr.mxu0 0.0
    %1174 = vmatpush1.msra.mxu0 %v1083
    %1175 = vmatprep.subr.mxu0 0.0
    %1176 = vmatpush1.msra.mxu0 %v1085
    %1177 = vmatprep.subr.mxu0 0.0
    %1178 = vmatpush1.msra.mxu0 %v1087
    %1179 = vmatprep.subr.mxu0 0.0
    %1180 = vmatpush1.msra.mxu0 %v1089
    %1181 = vmatprep.subr.mxu0 0.0
    %1182 = vmatpush1.msra.mxu0 %v1091
    %1183 = vmatprep.subr.mxu0 0.0
    %1184 = vmatpush1.msra.mxu0 0.0
    %1185 = vmatprep.subr.mxu0 0.0
    %1186 = vmatpush1.msra.mxu0 0.0
    %1187 = vmatprep.subr.mxu0 0.0
    %1188 = vmatpush1.msra.mxu0 0.0
    %1189 = vmatprep.subr.mxu0 0.0
    %1190 = vmatpush1.msra.mxu0 0.0
    %1191 = vmatprep.subr.mxu0 0.0
    %1192 = vmatpush1.msra.mxu0 0.0
    %1193 = vmatprep.subr.mxu0 0.0
    %1194 = vmatpush1.msra.mxu0 0.0
    %1195 = vmatprep.subr.mxu0 0.0
    %1196 = vmatpush1.msra.mxu0 0.0
    %1197 = vmatprep.subr.mxu0 0.0
    %1198 = vmatpush1.msra.mxu0 0.0
    %1199 = vmatprep.mubr.f32.mxu0 %v1118
    %1200 = vmatmul.mubr.f32.gmra.mrb[0].mxu0 %v1008
    %v1201 = vpop.f32.mrb[0].mxu0
    %v1202 = vadd.f32 0.0, %v1201
    %v1203 = vpop.f32.mrb[0].mxu0
    %1204 = vmatprep.mubr.f32.mxu0 %v1121
    %1205 = vmatmul.mubr.f32.gmra.mrb[0].mxu0 %v1009
    %v1206 = vpop.f32.mrb[0].mxu0
    %v1207 = vadd.f32 0.0, %v1206
    %v1208 = vpop.f32.mrb[0].mxu0
    %1209 = vmatprep.mubr.f32.mxu0 %v1124
    %1210 = vmatmul.mubr.f32.gmra.mrb[0].mxu0 %v1010
    %v1211 = vpop.f32.mrb[0].mxu0
    %v1212 = vadd.f32 0.0, %v1211
    %v1213 = vpop.f32.mrb[0].mxu0
    %1214 = vmatprep.mubr.f32.mxu0 %v1127
    %1215 = vmatmul.mubr.f32.gmra.mrb[0].mxu0 %v1011
    %v1216 = vpop.f32.mrb[0].mxu0
    %v1217 = vadd.f32 0.0, %v1216
    %v1218 = vpop.f32.mrb[0].mxu0
    %1219 = vmatprep.mubr.f32.mxu0 %v1130
    %1220 = vmatmul.mubr.f32.gmra.mrb[0].mxu0 %v1012
    %v1221 = vpop.f32.mrb[0].mxu0
    %v1222 = vadd.f32 0.0, %v1221
    %v1223 = vpop.f32.mrb[0].mxu0
    %1224 = vmatprep.mubr.f32.mxu0 %v1133
    %1225 = vmatmul.mubr.f32.gmra.mrb[0].mxu0 %v1013
    %v1226 = vpop.f32.mrb[0].mxu0
    %v1227 = vadd.f32 0.0, %v1226
    %v1228 = vpop.f32.mrb[0].mxu0
    %1229 = vdwg.mxu0
    %1230 = vmatprep.subr.mxu0 0.0
    %1231 = vmatpush1.msra.mxu0 %v331
    %1232 = vmatprep.subr.mxu0 0.0
    %1233 = vmatpush1.msra.mxu0 %v332
    %1234 = vmatprep.subr.mxu0 0.0
    %1235 = vmatpush1.msra.mxu0 %v333
    %1236 = vmatprep.subr.mxu0 0.0
    %1237 = vmatpush1.msra.mxu0 %v334
    %1238 = vmatprep.subr.mxu0 0.0
    %1239 = vmatpush1.msra.mxu0 %v335
    %1240 = vmatprep.subr.mxu0 0.0
    %1241 = vmatpush1.msra.mxu0 %v336
    %1242 = vmatprep.subr.mxu0 0.0
    %1243 = vmatpush1.msra.mxu0 %v337
    %1244 = vmatprep.subr.mxu0 0.0
    %1245 = vmatpush1.msra.mxu0 %v338
    %1246 = vmatprep.subr.mxu0 0.0
    %1247 = vmatpush1.msra.mxu0 %v339
    %1248 = vmatprep.subr.mxu0 0.0
    %1249 = vmatpush1.msra.mxu0 %v340
    %1250 = vmatprep.subr.mxu0 0.0
    %1251 = vmatpush1.msra.mxu0 %v341
    %1252 = vmatprep.subr.mxu0 0.0
    %1253 = vmatpush1.msra.mxu0 %v342
    %1254 = vmatprep.subr.mxu0 0.0
    %1255 = vmatpush1.msra.mxu0 %v343
    %1256 = vmatprep.subr.mxu0 0.0
    %1257 = vmatpush1.msra.mxu0 %v344
    %1258 = vmatprep.subr.mxu0 0.0
    %1259 = vmatpush1.msra.mxu0 %v345
    %1260 = vmatprep.subr.mxu0 0.0
    %1261 = vmatpush1.msra.mxu0 %v346
    %1262 = vmatprep.subr.mxu0 0.0
    %1263 = vmatpush1.msra.mxu0 %v347
    %1264 = vmatprep.subr.mxu0 0.0
    %1265 = vmatpush1.msra.mxu0 %v348
    %1266 = vmatprep.subr.mxu0 0.0
    %1267 = vmatpush1.msra.mxu0 %v349
    %1268 = vmatprep.subr.mxu0 0.0
    %1269 = vmatpush1.msra.mxu0 %v350
    %1270 = vmatprep.subr.mxu0 0.0
    %1271 = vmatpush1.msra.mxu0 %v351
    %1272 = vmatprep.subr.mxu0 0.0
    %1273 = vmatpush1.msra.mxu0 %v352
    %1274 = vmatprep.subr.mxu0 0.0
    %1275 = vmatpush1.msra.mxu0 %v353
    %1276 = vmatprep.subr.mxu0 0.0
    %1277 = vmatpush1.msra.mxu0 %v354
    %1278 = vmatprep.subr.mxu0 0.0
    %1279 = vmatpush1.msra.mxu0 0.0
    %1280 = vmatprep.subr.mxu0 0.0
    %1281 = vmatpush1.msra.mxu0 0.0
    %1282 = vmatprep.subr.mxu0 0.0
    %1283 = vmatpush1.msra.mxu0 0.0
    %1284 = vmatprep.subr.mxu0 0.0
    %1285 = vmatpush1.msra.mxu0 0.0
    %1286 = vmatprep.subr.mxu0 0.0
    %1287 = vmatpush1.msra.mxu0 0.0
    %1288 = vmatprep.subr.mxu0 0.0
    %1289 = vmatpush1.msra.mxu0 0.0
    %1290 = vmatprep.subr.mxu0 0.0
    %1291 = vmatpush1.msra.mxu0 0.0
    %1292 = vmatprep.subr.mxu0 0.0
    %1293 = vmatpush1.msra.mxu0 0.0
    %1294 = vmatprep.mubr.f32.mxu0 %v1118
    %1295 = vmatmul.mubr.f32.gmra.mrb[0].mxu0 %v1008
    %v1296 = vpop.f32.mrb[0].mxu0
    %v1297 = vadd.f32 0.0, %v1296
    %v1298 = vpop.f32.mrb[0].mxu0
    %1299 = vmatprep.mubr.f32.mxu0 %v1121
    %1300 = vmatmul.mubr.f32.gmra.mrb[0].mxu0 %v1009
    %v1301 = vpop.f32.mrb[0].mxu0
    %v1302 = vadd.f32 0.0, %v1301
    %v1303 = vpop.f32.mrb[0].mxu0
    %1304 = vmatprep.mubr.f32.mxu0 %v1124
    %1305 = vmatmul.mubr.f32.gmra.mrb[0].mxu0 %v1010
    %v1306 = vpop.f32.mrb[0].mxu0
    %v1307 = vadd.f32 0.0, %v1306
    %v1308 = vpop.f32.mrb[0].mxu0
    %1309 = vmatprep.mubr.f32.mxu0 %v1127
    %1310 = vmatmul.mubr.f32.gmra.mrb[0].mxu0 %v1011
    %v1311 = vpop.f32.mrb[0].mxu0
    %v1312 = vadd.f32 0.0, %v1311
    %v1313 = vpop.f32.mrb[0].mxu0
    %1314 = vmatprep.mubr.f32.mxu0 %v1130
    %1315 = vmatmul.mubr.f32.gmra.mrb[0].mxu0 %v1012
    %v1316 = vpop.f32.mrb[0].mxu0
    %v1317 = vadd.f32 0.0, %v1316
    %v1318 = vpop.f32.mrb[0].mxu0
    %1319 = vmatprep.mubr.f32.mxu0 %v1133
    %1320 = vmatmul.mubr.f32.gmra.mrb[0].mxu0 %v1013
    %v1321 = vpop.f32.mrb[0].mxu0
    %v1322 = vadd.f32 0.0, %v1321
    %v1323 = vpop.f32.mrb[0].mxu0
    %1324 = vdwg.mxu0
    %v1325 = vrcp.pop %v1297
    %v1326 = vmul.f32 %v1202, %v1325
    %v1327 = vrcp.pop %v1302
    %v1328 = vmul.f32 %v1207, %v1327
    %v1329 = vrcp.pop %v1307
    %v1330 = vmul.f32 %v1212, %v1329
    %v1331 = vrcp.pop %v1312
    %v1332 = vmul.f32 %v1217, %v1331
    %v1333 = vrcp.pop %v1317
    %v1334 = vmul.f32 %v1222, %v1333
    %v1335 = vrcp.pop %v1322
    %v1336 = vmul.f32 %v1227, %v1335
    %v1337 = vlaneseq
    %v1338 = vshrl.u32 %v1337, 7
    %v1339 = vsub.s32 0, %v1338
    %v1340 = vrot.slane %v103, %v1339
    %1345 = vrot.lane.b32.xlu0 %v110, 32
    %v1346 = vpop.permute.xlu0 %1345
    %1347 = vrot.lane.b32.xlu0 %v111, 32
    %v1348 = vpop.permute.xlu0 %1347
    %1349 = vrot.lane.b32.xlu0 %v112, 32
    %v1350 = vpop.permute.xlu0 %1349
    %1351 = vrot.lane.b32.xlu0 %v113, 32
    %v1352 = vpop.permute.xlu0 %1351
    %v1358 = vsel %vm114, %v1326, 0
    %v1361 = vsel %vm114, %v1328, 0
    %v1364 = vsel %vm114, %v1330, 0
    %v1367 = vsel %vm114, %v1332, 0
    %v1370 = vsel %vm114, %v1334, 0
    %v1373 = vsel %vm114, %v1336, 0
    %1375 = vmatprep.subr.mxu0 0.0
    %1376 = vmatpush1.msra.mxu0 %v1346
    %1377 = vmatprep.subr.mxu0 0.0
    %1378 = vmatpush1.msra.mxu0 %v1348
    %1379 = vmatprep.subr.mxu0 0.0
    %1380 = vmatpush1.msra.mxu0 %v1350
    %1381 = vmatprep.subr.mxu0 0.0
    %1382 = vmatpush1.msra.mxu0 %v1352
    %1383 = vmatprep.subr.mxu0 0.0
    %1384 = vmatpush1.msra.mxu0 0.0
    %1385 = vmatprep.subr.mxu0 0.0
    %1386 = vmatpush1.msra.mxu0 0.0
    %1387 = vmatprep.subr.mxu0 0.0
    %1388 = vmatpush1.msra.mxu0 0.0
    %1389 = vmatprep.subr.mxu0 0.0
    %1390 = vmatpush1.msra.mxu0 0.0
    %1391 = vmatprep.subr.mxu0 0.0
    %1392 = vmatpush1.msra.mxu0 0.0
    %1393 = vmatprep.subr.mxu0 0.0
    %1394 = vmatpush1.msra.mxu0 0.0
    %1395 = vmatprep.subr.mxu0 0.0
    %1396 = vmatpush1.msra.mxu0 0.0
    %1397 = vmatprep.subr.mxu0 0.0
    %1398 = vmatpush1.msra.mxu0 0.0
    %1399 = vmatprep.subr.mxu0 0.0
    %1400 = vmatpush1.msra.mxu0 0.0
    %1401 = vmatprep.subr.mxu0 0.0
    %1402 = vmatpush1.msra.mxu0 0.0
    %1403 = vmatprep.subr.mxu0 0.0
    %1404 = vmatpush1.msra.mxu0 0.0
    %1405 = vmatprep.subr.mxu0 0.0
    %1406 = vmatpush1.msra.mxu0 0.0
    %1407 = vmatprep.subr.mxu0 0.0
    %1408 = vmatpush1.msra.mxu0 0.0
    %1409 = vmatprep.subr.mxu0 0.0
    %1410 = vmatpush1.msra.mxu0 0.0
    %1411 = vmatprep.subr.mxu0 0.0
    %1412 = vmatpush1.msra.mxu0 0.0
    %1413 = vmatprep.subr.mxu0 0.0
    %1414 = vmatpush1.msra.mxu0 0.0
    %1415 = vmatprep.subr.mxu0 0.0
    %1416 = vmatpush1.msra.mxu0 0.0
    %1417 = vmatprep.subr.mxu0 0.0
    %1418 = vmatpush1.msra.mxu0 0.0
    %1419 = vmatprep.subr.mxu0 0.0
    %1420 = vmatpush1.msra.mxu0 0.0
    %1421 = vmatprep.subr.mxu0 0.0
    %1422 = vmatpush1.msra.mxu0 0.0
    %1423 = vmatprep.subr.mxu0 0.0
    %1424 = vmatpush1.msra.mxu0 0.0
    %1425 = vmatprep.subr.mxu0 0.0
    %1426 = vmatpush1.msra.mxu0 0.0
    %1427 = vmatprep.subr.mxu0 0.0
    %1428 = vmatpush1.msra.mxu0 0.0
    %1429 = vmatprep.subr.mxu0 0.0
    %1430 = vmatpush1.msra.mxu0 0.0
    %1431 = vmatprep.subr.mxu0 0.0
    %1432 = vmatpush1.msra.mxu0 0.0
    %1433 = vmatprep.subr.mxu0 0.0
    %1434 = vmatpush1.msra.mxu0 0.0
    %1435 = vmatprep.subr.mxu0 0.0
    %1436 = vmatpush1.msra.mxu0 0.0
    %1437 = vmatprep.subr.mxu0 0.0
    %1438 = vmatpush1.msra.mxu0 0.0
    %1439 = vmatprep.mubr.f32.mxu0 0.0
    %1440 = vmatmul.mubr.f32.gmra.mrb[0].mxu0 %v1358
    %v1441 = vpop.f32.mrb[0].mxu0
    %v1442 = vadd.f32 %v1340, %v1441
    %v1443 = vpop.f32.mrb[0].mxu0
    %1444 = vmatprep.mubr.f32.mxu0 0.0
    %1445 = vmatmul.mubr.f32.gmra.mrb[0].mxu0 %v1361
    %v1446 = vpop.f32.mrb[0].mxu0
    %v1447 = vadd.f32 %v1340, %v1446
    %v1448 = vpop.f32.mrb[0].mxu0
    %1449 = vmatprep.mubr.f32.mxu0 0.0
    %1450 = vmatmul.mubr.f32.gmra.mrb[0].mxu0 %v1364
    %v1451 = vpop.f32.mrb[0].mxu0
    %v1452 = vadd.f32 %v1340, %v1451
    %v1453 = vpop.f32.mrb[0].mxu0
    %1454 = vmatprep.mubr.f32.mxu0 0.0
    %1455 = vmatmul.mubr.f32.gmra.mrb[0].mxu0 %v1367
    %v1456 = vpop.f32.mrb[0].mxu0
    %v1457 = vadd.f32 %v1340, %v1456
    %v1458 = vpop.f32.mrb[0].mxu0
    %1459 = vmatprep.mubr.f32.mxu0 0.0
    %1460 = vmatmul.mubr.f32.gmra.mrb[0].mxu0 %v1370
    %v1461 = vpop.f32.mrb[0].mxu0
    %v1462 = vadd.f32 %v1340, %v1461
    %v1463 = vpop.f32.mrb[0].mxu0
    %1464 = vmatprep.mubr.f32.mxu0 0.0
    %1465 = vmatmul.mubr.f32.gmra.mrb[0].mxu0 %v1373
    %v1466 = vpop.f32.mrb[0].mxu0
    %v1467 = vadd.f32 %v1340, %v1466
    %v1468 = vpop.f32.mrb[0].mxu0
    %1469 = vdwg.mxu0
    %v1470 = vadd.f32 %v92, %v1442
    %v1471 = vadd.f32 %v93, %v1447
    %v1472 = vadd.f32 %v94, %v1452
    %v1473 = vadd.f32 %v95, %v1457
    %v1474 = vadd.f32 %v96, %v1462
    %v1475 = vadd.f32 %v97, %v1467
    %v1476 = vsel %vm114, %v1470, 0.0
    %1477 = vadd.xlane.f32.xlu0 %v1476
    %v1478 = vpop.xlane.xlu0 %1477
    %v1479 = vsel %vm114, %v1471, 0.0
    %1480 = vadd.xlane.f32.xlu0 %v1479
    %v1481 = vpop.xlane.xlu0 %1480
    %v1482 = vsel %vm114, %v1472, 0.0
    %1483 = vadd.xlane.f32.xlu0 %v1482
    %v1484 = vpop.xlane.xlu0 %1483
    %v1485 = vsel %vm114, %v1473, 0.0
    %1486 = vadd.xlane.f32.xlu0 %v1485
    %v1487 = vpop.xlane.xlu0 %1486
    %v1488 = vsel %vm114, %v1474, 0.0
    %1489 = vadd.xlane.f32.xlu0 %v1488
    %v1490 = vpop.xlane.xlu0 %1489
    %v1491 = vsel %vm114, %v1475, 0.0
    %1492 = vadd.xlane.f32.xlu0 %v1491
    %v1493 = vpop.xlane.xlu0 %1492
    %v1494 = vmul.f32 %v1478, %v133
    %v1495 = vmul.f32 %v1481, %v133
    %v1496 = vmul.f32 %v1484, %v133
    %v1497 = vmul.f32 %v1487, %v133
    %v1498 = vmul.f32 %v1490, %v133
    %v1499 = vmul.f32 %v1493, %v133
    %v1500 = vsub.f32 %v1470, %v1494
    %v1501 = vsub.f32 %v1471, %v1495
    %v1502 = vsub.f32 %v1472, %v1496
    %v1503 = vsub.f32 %v1473, %v1497
    %v1504 = vsub.f32 %v1474, %v1498
    %v1505 = vsub.f32 %v1475, %v1499
    %v1506 = vmul.f32 %v1500, %v1500
    %v1507 = vmul.f32 %v1501, %v1501
    %v1508 = vmul.f32 %v1502, %v1502
    %v1509 = vmul.f32 %v1503, %v1503
    %v1510 = vmul.f32 %v1504, %v1504
    %v1511 = vmul.f32 %v1505, %v1505
    %v1512 = vsel %vm114, %v1506, 0.0
    %1513 = vadd.xlane.f32.xlu0 %v1512
    %v1514 = vpop.xlane.xlu0 %1513
    %v1515 = vsel %vm114, %v1507, 0.0
    %1516 = vadd.xlane.f32.xlu0 %v1515
    %v1517 = vpop.xlane.xlu0 %1516
    %v1518 = vsel %vm114, %v1508, 0.0
    %1519 = vadd.xlane.f32.xlu0 %v1518
    %v1520 = vpop.xlane.xlu0 %1519
    %v1521 = vsel %vm114, %v1509, 0.0
    %1522 = vadd.xlane.f32.xlu0 %v1521
    %v1523 = vpop.xlane.xlu0 %1522
    %v1524 = vsel %vm114, %v1510, 0.0
    %1525 = vadd.xlane.f32.xlu0 %v1524
    %v1526 = vpop.xlane.xlu0 %1525
    %v1527 = vsel %vm114, %v1511, 0.0
    %1528 = vadd.xlane.f32.xlu0 %v1527
    %v1529 = vpop.xlane.xlu0 %1528
    %v1530 = vmul.f32 %v1514, %v133
    %v1531 = vmul.f32 %v1517, %v133
    %v1532 = vmul.f32 %v1520, %v133
    %v1533 = vmul.f32 %v1523, %v133
    %v1534 = vmul.f32 %v1526, %v133
    %v1535 = vmul.f32 %v1529, %v133
    %v1536 = vadd.f32 %v1530, 1e-05
    %v1537 = vadd.f32 %v1531, 1e-05
    %v1538 = vadd.f32 %v1532, 1e-05
    %v1539 = vadd.f32 %v1533, 1e-05
    %v1540 = vadd.f32 %v1534, 1e-05
    %v1541 = vadd.f32 %v1535, 1e-05
    %v1542 = vrsqrt.pop %v1536
    %v1543 = vrsqrt.pop %v1537
    %v1544 = vrsqrt.pop %v1538
    %v1545 = vrsqrt.pop %v1539
    %v1546 = vrsqrt.pop %v1540
    %v1547 = vrsqrt.pop %v1541
    %v1548 = vmul.f32 %v1500, %v1542
    %v1549 = vmul.f32 %v1501, %v1543
    %v1550 = vmul.f32 %v1502, %v1544
    %v1551 = vmul.f32 %v1503, %v1545
    %v1552 = vmul.f32 %v1504, %v1546
    %v1553 = vmul.f32 %v1505, %v1547
    %v1554 = vlaneseq
    %v1555 = vshrl.u32 %v1554, 7
    %v1556 = vsub.s32 0, %v1555
    %v1557 = vrot.slane %v100, %v1556
    %v1558 = vmul.f32 %v1548, %v1557
    %v1559 = vmul.f32 %v1549, %v1557
    %v1560 = vmul.f32 %v1550, %v1557
    %v1561 = vmul.f32 %v1551, %v1557
    %v1562 = vmul.f32 %v1552, %v1557
    %v1563 = vmul.f32 %v1553, %v1557
    %v1564 = vlaneseq
    %v1565 = vshrl.u32 %v1564, 7
    %v1566 = vsub.s32 0, %v1565
    %v1567 = vrot.slane %v101, %v1566
    %v1568 = vadd.f32 %v1558, %v1567
    %v1569 = vadd.f32 %v1559, %v1567
    %v1570 = vadd.f32 %v1560, %v1567
    %v1571 = vadd.f32 %v1561, %v1567
    %v1572 = vadd.f32 %v1562, %v1567
    %v1573 = vadd.f32 %v1563, %v1567
    %v1574 = vlaneseq
    %v1575 = vshrl.u32 %v1574, 7
    %v1576 = vsub.s32 0, %v1575
    %v1577 = vrot.slane %v104, %v1576
    %v1579 = vsel %vm114, %v1568, 0
    %v1582 = vsel %vm114, %v1569, 0
    %v1585 = vsel %vm114, %v1570, 0
    %v1588 = vsel %vm114, %v1571, 0
    %v1591 = vsel %vm114, %v1572, 0
    %v1594 = vsel %vm114, %v1573, 0
    %1596 = vmatprep.subr.mxu0 0.0
    %1597 = vmatpush1.msra.mxu0 %v106
    %1598 = vmatprep.subr.mxu0 0.0
    %1599 = vmatpush1.msra.mxu0 %v107
    %1600 = vmatprep.subr.mxu0 0.0
    %1601 = vmatpush1.msra.mxu0 %v108
    %1602 = vmatprep.subr.mxu0 0.0
    %1603 = vmatpush1.msra.mxu0 %v109
    %1604 = vmatprep.subr.mxu0 0.0
    %1605 = vmatpush1.msra.mxu0 0.0
    %1606 = vmatprep.subr.mxu0 0.0
    %1607 = vmatpush1.msra.mxu0 0.0
    %1608 = vmatprep.subr.mxu0 0.0
    %1609 = vmatpush1.msra.mxu0 0.0
    %1610 = vmatprep.subr.mxu0 0.0
    %1611 = vmatpush1.msra.mxu0 0.0
    %1612 = vmatprep.subr.mxu0 0.0
    %1613 = vmatpush1.msra.mxu0 0.0
    %1614 = vmatprep.subr.mxu0 0.0
    %1615 = vmatpush1.msra.mxu0 0.0
    %1616 = vmatprep.subr.mxu0 0.0
    %1617 = vmatpush1.msra.mxu0 0.0
    %1618 = vmatprep.subr.mxu0 0.0
    %1619 = vmatpush1.msra.mxu0 0.0
    %1620 = vmatprep.subr.mxu0 0.0
    %1621 = vmatpush1.msra.mxu0 0.0
    %1622 = vmatprep.subr.mxu0 0.0
    %1623 = vmatpush1.msra.mxu0 0.0
    %1624 = vmatprep.subr.mxu0 0.0
    %1625 = vmatpush1.msra.mxu0 0.0
    %1626 = vmatprep.subr.mxu0 0.0
    %1627 = vmatpush1.msra.mxu0 0.0
    %1628 = vmatprep.subr.mxu0 0.0
    %1629 = vmatpush1.msra.mxu0 0.0
    %1630 = vmatprep.subr.mxu0 0.0
    %1631 = vmatpush1.msra.mxu0 0.0
    %1632 = vmatprep.subr.mxu0 0.0
    %1633 = vmatpush1.msra.mxu0 0.0
    %1634 = vmatprep.subr.mxu0 0.0
    %1635 = vmatpush1.msra.mxu0 0.0
    %1636 = vmatprep.subr.mxu0 0.0
    %1637 = vmatpush1.msra.mxu0 0.0
    %1638 = vmatprep.subr.mxu0 0.0
    %1639 = vmatpush1.msra.mxu0 0.0
    %1640 = vmatprep.subr.mxu0 0.0
    %1641 = vmatpush1.msra.mxu0 0.0
    %1642 = vmatprep.subr.mxu0 0.0
    %1643 = vmatpush1.msra.mxu0 0.0
    %1644 = vmatprep.subr.mxu0 0.0
    %1645 = vmatpush1.msra.mxu0 0.0
    %1646 = vmatprep.subr.mxu0 0.0
    %1647 = vmatpush1.msra.mxu0 0.0
    %1648 = vmatprep.subr.mxu0 0.0
    %1649 = vmatpush1.msra.mxu0 0.0
    %1650 = vmatprep.subr.mxu0 0.0
    %1651 = vmatpush1.msra.mxu0 0.0
    %1652 = vmatprep.subr.mxu0 0.0
    %1653 = vmatpush1.msra.mxu0 0.0
    %1654 = vmatprep.subr.mxu0 0.0
    %1655 = vmatpush1.msra.mxu0 0.0
    %1656 = vmatprep.subr.mxu0 0.0
    %1657 = vmatpush1.msra.mxu0 0.0
    %1658 = vmatprep.subr.mxu0 0.0
    %1659 = vmatpush1.msra.mxu0 0.0
    %1660 = vmatprep.mubr.f32.mxu0 0.0
    %1661 = vmatmul.mubr.f32.gmra.mrb[0].mxu0 %v1579
    %v1662 = vpop.f32.mrb[0].mxu0
    %v1663 = vadd.f32 %v1577, %v1662
    %v1664 = vpop.f32.mrb[0].mxu0
    %1665 = vmatprep.mubr.f32.mxu0 0.0
    %1666 = vmatmul.mubr.f32.gmra.mrb[0].mxu0 %v1582
    %v1667 = vpop.f32.mrb[0].mxu0
    %v1668 = vadd.f32 %v1577, %v1667
    %v1669 = vpop.f32.mrb[0].mxu0
    %1670 = vmatprep.mubr.f32.mxu0 0.0
    %1671 = vmatmul.mubr.f32.gmra.mrb[0].mxu0 %v1585
    %v1672 = vpop.f32.mrb[0].mxu0
    %v1673 = vadd.f32 %v1577, %v1672
    %v1674 = vpop.f32.mrb[0].mxu0
    %1675 = vmatprep.mubr.f32.mxu0 0.0
    %1676 = vmatmul.mubr.f32.gmra.mrb[0].mxu0 %v1588
    %v1677 = vpop.f32.mrb[0].mxu0
    %v1678 = vadd.f32 %v1577, %v1677
    %v1679 = vpop.f32.mrb[0].mxu0
    %1680 = vmatprep.mubr.f32.mxu0 0.0
    %1681 = vmatmul.mubr.f32.gmra.mrb[0].mxu0 %v1591
    %v1682 = vpop.f32.mrb[0].mxu0
    %v1683 = vadd.f32 %v1577, %v1682
    %v1684 = vpop.f32.mrb[0].mxu0
    %1685 = vmatprep.mubr.f32.mxu0 0.0
    %1686 = vmatmul.mubr.f32.gmra.mrb[0].mxu0 %v1594
    %v1687 = vpop.f32.mrb[0].mxu0
    %v1688 = vadd.f32 %v1577, %v1687
    %v1689 = vpop.f32.mrb[0].mxu0
    %1690 = vdwg.mxu0
    %v1691 = vmul.f32 %v1663, 0.70710677
    %v1692 = vmul.f32 %v1668, 0.70710677
    %v1693 = vmul.f32 %v1673, 0.70710677
    %v1694 = vmul.f32 %v1678, 0.70710677
    %v1695 = vmul.f32 %v1683, 0.70710677
    %v1696 = vmul.f32 %v1688, 0.70710677
    %v1697 = verf.f32.pop %v1691
    %v1698 = verf.f32.pop %v1692
    %v1699 = verf.f32.pop %v1693
    %v1700 = verf.f32.pop %v1694
    %v1701 = verf.f32.pop %v1695
    %v1702 = verf.f32.pop %v1696
    %v1703 = vmul.f32 %v1697, 0.5
    %v1704 = vmul.f32 %v1698, 0.5
    %v1705 = vmul.f32 %v1699, 0.5
    %v1706 = vmul.f32 %v1700, 0.5
    %v1707 = vmul.f32 %v1701, 0.5
    %v1708 = vmul.f32 %v1702, 0.5
    %v1709 = vadd.f32 %v1703, 0.5
    %v1710 = vadd.f32 %v1704, 0.5
    %v1711 = vadd.f32 %v1705, 0.5
    %v1712 = vadd.f32 %v1706, 0.5
    %v1713 = vadd.f32 %v1707, 0.5
    %v1714 = vadd.f32 %v1708, 0.5
    %v1715 = vmul.f32 %v1663, %v1709
    %v1716 = vmul.f32 %v1668, %v1710
    %v1717 = vmul.f32 %v1673, %v1711
    %v1718 = vmul.f32 %v1678, %v1712
    %v1719 = vmul.f32 %v1683, %v1713
    %v1720 = vmul.f32 %v1688, %v1714
    %v1721 = vld [vmem:[#allocation7] sm:$0xff]
    %v1722 = vld [vmem:[#allocation7 + $0x8] sm:$0xff]
    %v1723 = vld [vmem:[#allocation7 + $0x10] sm:$0xff]
    %v1724 = vld [vmem:[#allocation7 + $0x18] sm:$0xff]
    %v1725 = vld [vmem:[#allocation7 + $0x20] sm:$0xff]
    %v1726 = vld [vmem:[#allocation7 + $0x28] sm:$0xff]
    %v1727 = vld [vmem:[#allocation7 + $0x30] sm:$0xff]
    %v1728 = vld [vmem:[#allocation7 + $0x38] sm:$0xff]
    %v1729 = vld [vmem:[#allocation7 + $0x40] sm:$0xff]
    %v1730 = vld [vmem:[#allocation7 + $0x48] sm:$0xff]
    %v1731 = vld [vmem:[#allocation7 + $0x50] sm:$0xff]
    %v1732 = vld [vmem:[#allocation7 + $0x58] sm:$0xff]
    %v1733 = vld [vmem:[#allocation7 + $0x60] sm:$0xff]
    %v1734 = vld [vmem:[#allocation7 + $0x68] sm:$0xff]
    %v1735 = vld [vmem:[#allocation7 + $0x70] sm:$0xff]
    %v1736 = vld [vmem:[#allocation7 + $0x78] sm:$0xff]
    %v1737 = vlaneseq
    %v1738 = vshrl.u32 %v1737, 7
    %v1739 = vsub.s32 0, %v1738
    %v1740 = vrot.slane %v105, %v1739
    %1741 = vmatprep.subr.mxu0 0.0
    %1742 = vmatpush1.msra.mxu0 %v1721
    %1743 = vmatprep.subr.mxu0 0.0
    %1744 = vmatpush1.msra.mxu0 %v1722
    %1745 = vmatprep.subr.mxu0 0.0
    %1746 = vmatpush1.msra.mxu0 %v1723
    %1747 = vmatprep.subr.mxu0 0.0
    %1748 = vmatpush1.msra.mxu0 %v1724
    %1749 = vmatprep.subr.mxu0 0.0
    %1750 = vmatpush1.msra.mxu0 %v1725
    %1751 = vmatprep.subr.mxu0 0.0
    %1752 = vmatpush1.msra.mxu0 %v1726
    %1753 = vmatprep.subr.mxu0 0.0
    %1754 = vmatpush1.msra.mxu0 %v1727
    %1755 = vmatprep.subr.mxu0 0.0
    %1756 = vmatpush1.msra.mxu0 %v1728
    %1757 = vmatprep.subr.mxu0 0.0
    %1758 = vmatpush1.msra.mxu0 %v1729
    %1759 = vmatprep.subr.mxu0 0.0
    %1760 = vmatpush1.msra.mxu0 %v1730
    %1761 = vmatprep.subr.mxu0 0.0
    %1762 = vmatpush1.msra.mxu0 %v1731
    %1763 = vmatprep.subr.mxu0 0.0
    %1764 = vmatpush1.msra.mxu0 %v1732
    %1765 = vmatprep.subr.mxu0 0.0
    %1766 = vmatpush1.msra.mxu0 %v1733
    %1767 = vmatprep.subr.mxu0 0.0
    %1768 = vmatpush1.msra.mxu0 %v1734
    %1769 = vmatprep.subr.mxu0 0.0
    %1770 = vmatpush1.msra.mxu0 %v1735
    %1771 = vmatprep.subr.mxu0 0.0
    %1772 = vmatpush1.msra.mxu0 %v1736
    %1773 = vmatprep.subr.mxu0 0.0
    %1774 = vmatpush1.msra.mxu0 0.0
    %1775 = vmatprep.subr.mxu0 0.0
    %1776 = vmatpush1.msra.mxu0 0.0
    %1777 = vmatprep.subr.mxu0 0.0
    %1778 = vmatpush1.msra.mxu0 0.0
    %1779 = vmatprep.subr.mxu0 0.0
    %1780 = vmatpush1.msra.mxu0 0.0
    %1781 = vmatprep.subr.mxu0 0.0
    %1782 = vmatpush1.msra.mxu0 0.0
    %1783 = vmatprep.subr.mxu0 0.0
    %1784 = vmatpush1.msra.mxu0 0.0
    %1785 = vmatprep.subr.mxu0 0.0
    %1786 = vmatpush1.msra.mxu0 0.0
    %1787 = vmatprep.subr.mxu0 0.0
    %1788 = vmatpush1.msra.mxu0 0.0
    %1789 = vmatprep.subr.mxu0 0.0
    %1790 = vmatpush1.msra.mxu0 0.0
    %1791 = vmatprep.subr.mxu0 0.0
    %1792 = vmatpush1.msra.mxu0 0.0
    %1793 = vmatprep.subr.mxu0 0.0
    %1794 = vmatpush1.msra.mxu0 0.0
    %1795 = vmatprep.subr.mxu0 0.0
    %1796 = vmatpush1.msra.mxu0 0.0
    %1797 = vmatprep.subr.mxu0 0.0
    %1798 = vmatpush1.msra.mxu0 0.0
    %1799 = vmatprep.subr.mxu0 0.0
    %1800 = vmatpush1.msra.mxu0 0.0
    %1801 = vmatprep.subr.mxu0 0.0
    %1802 = vmatpush1.msra.mxu0 0.0
    %1803 = vmatprep.subr.mxu0 0.0
    %1804 = vmatpush1.msra.mxu0 0.0
    %1805 = vmatprep.mubr.f32.mxu0 0.0
    %1806 = vmatmul.mubr.f32.gmra.mrb[0].mxu0 %v1715
    %v1807 = vpop.f32.mrb[0].mxu0
    %v1808 = vadd.f32 %v1740, %v1807
    %v1809 = vpop.f32.mrb[0].mxu0
    %1810 = vmatprep.mubr.f32.mxu0 0.0
    %1811 = vmatmul.mubr.f32.gmra.mrb[0].mxu0 %v1716
    %v1812 = vpop.f32.mrb[0].mxu0
    %v1813 = vadd.f32 %v1740, %v1812
    %v1814 = vpop.f32.mrb[0].mxu0
    %1815 = vmatprep.mubr.f32.mxu0 0.0
    %1816 = vmatmul.mubr.f32.gmra.mrb[0].mxu0 %v1717
    %v1817 = vpop.f32.mrb[0].mxu0
    %v1818 = vadd.f32 %v1740, %v1817
    %v1819 = vpop.f32.mrb[0].mxu0
    %1820 = vmatprep.mubr.f32.mxu0 0.0
    %1821 = vmatmul.mubr.f32.gmra.mrb[0].mxu0 %v1718
    %v1822 = vpop.f32.mrb[0].mxu0
    %v1823 = vadd.f32 %v1740, %v1822
    %v1824 = vpop.f32.mrb[0].mxu0
    %1825 = vmatprep.mubr.f32.mxu0 0.0
    %1826 = vmatmul.mubr.f32.gmra.mrb[0].mxu0 %v1719
    %v1827 = vpop.f32.mrb[0].mxu0
    %v1828 = vadd.f32 %v1740, %v1827
    %v1829 = vpop.f32.mrb[0].mxu0
    %1830 = vmatprep.mubr.f32.mxu0 0.0
    %1831 = vmatmul.mubr.f32.gmra.mrb[0].mxu0 %v1720
    %v1832 = vpop.f32.mrb[0].mxu0
    %v1833 = vadd.f32 %v1740, %v1832
    %v1834 = vpop.f32.mrb[0].mxu0
    %1835 = vdwg.mxu0
    %v1836 = vadd.f32 %v1470, %v1808
    %v1837 = vadd.f32 %v1471, %v1813
    %v1838 = vadd.f32 %v1472, %v1818
    %v1839 = vadd.f32 %v1473, %v1823
    %v1840 = vadd.f32 %v1474, %v1828
    %v1841 = vadd.f32 %v1475, %v1833
    %1842 = vst.msk [vmem:[#allocation11] sm:$0xff] %vm114, %v1836
    %1843 = vst.msk [vmem:[#allocation11 + $0x8] sm:$0xff] %vm114, %v1837
    %1844 = vst.msk [vmem:[#allocation11 + $0x10] sm:$0xff] %vm114, %v1838
    %1845 = vst.msk [vmem:[#allocation11 + $0x18] sm:$0xff] %vm114, %v1839
    %1846 = vst.msk [vmem:[#allocation11 + $0x20] sm:$0xff] %vm114, %v1840
    %1847 = vst.msk [vmem:[#allocation11 + $0x28] sm:$0xff] %vm114, %v1841
    // Predicated region
    $region46: #{_lambda_.1} parent=1 // pred_check
      _
    $region47: #{_lambda_.1} parent=1 // pred_check_branch
      %1849 = sbr.rel (0) target = $region49
    $region48: #{_lambda_.1} parent=1 // pred_region
      %s1851 = ssub.s32 768, 768
      %1852 = vsyncadd [#allocation4], %s1851
      %s1853 = sshll.u32 [#allocation11], 4
      %s1854 = int_to_ptr.vmem [resolvable:$true] %s1853
      %1859 = dma.vmem_to_hbm [thread:$0]  %s1854, 768, %s6, [#allocation4], 128, 128, 8
    $region49: #{_lambda_.1} parent=1 // pred_fallthru
      _
    // Predicated region
    $region50: #{_lambda_.1} parent=1 // pred_check
      _
    $region51: #{_lambda_.1} parent=1 // pred_check_branch
      %1861 = sbr.rel (0) target = $region53
    $region52: #{_lambda_.1} parent=1 // pred_region
      %1862 = dma.done [#allocation4], 768
    $region53: #{_lambda_.1} parent=1 // pred_fallthru
      _
    %1863 = vsyncpa [#allocation3], 1
    %1864 = vsyncpa [#allocation6], 1
    %1865 = vsyncpa [#allocation9], 1
    %1866 = vsyncpa [#allocation4], 1

</llo_original>
